<compile_context>
chip_gen: v7x
topology: tpu7x:2x2x1
jax: 0.10.0
libtpu: 0.0.40
codegen_flags: <defaults>
</compile_context>

<pallas_src>
import math
from functools import partial

import jax
import jax.numpy as jnp
from jax.experimental import pallas as pl
from jax.experimental.pallas import tpu as pltpu


def _round_up(n, m):
    return ((n + m - 1) // m) * m


# ---------------------------------------------------------------------------
# In-kernel helper: fused MaxPool2d(kernel=3, stride=2) on a flattened map.
# ---------------------------------------------------------------------------
def _maxpool3s2(y, H, W, row_stride, OH, OW):
    """y: (C, >= H*row_stride) f32, lane index = h*row_stride + w.
    Columns w in [W, row_stride) may hold values that are never read.
    Returns (C, OH, OW).  Uses only contiguous unit-stride slices, elementwise
    max and stack/concat (safe Mosaic lowering); ~(6 + OH + OW) slices total.
    """
    Lr = (H - 2) * row_stride                      # 3-row max (shift-and-max)
    r = jnp.maximum(jnp.maximum(y[:, 0:Lr],
                                y[:, row_stride:row_stride + Lr]),
                    y[:, 2 * row_stride:2 * row_stride + Lr])
    Lc = Lr - 2                                    # 3-col max (shift-and-max)
    c = jnp.maximum(jnp.maximum(r[:, 0:Lc], r[:, 1:1 + Lc]), r[:, 2:2 + Lc])
    Wneed = 2 * (OW - 1) + 1                       # only even output columns
    rows = [c[:, 2 * ho * row_stride: 2 * ho * row_stride + Wneed]
            for ho in range(OH)]
    R = jnp.stack(rows, axis=1)                    # (C, OH, Wneed)
    cols = [R[:, :, 2 * wo:2 * wo + 1] for wo in range(OW)]
    return jnp.concatenate(cols, axis=2)           # (C, OH, OW)


# ---------------------------------------------------------------------------
# Fused kernel: conv1 + ReLU + maxpool + conv2 + ReLU + maxpool + adaptive avg
# (one grid step == one image)
# ---------------------------------------------------------------------------
def _fused_kernel(p1_ref, w1_ref, b1_ref, w2_ref, b2_ref, o_ref, x2_ref, *,
                  C1H, C1W, P1H, P1W, K2, Pd2, Wp, C2H, C2W, P2H, P2W, OH, OW):
    # p1_ref: (K1p, C1H*C1W) bf16  conv1 im2col patches of this image
    # w1_ref: (Cmid_p, K1p) bf16 ; b1_ref: (Cmid_p, 1) f32
    # w2_ref: (Cout, K2p)  bf16 ; b2_ref: (Cout, 1)  f32
    # o_ref : (Cout, OH*OW) f32 ; x2_ref: (Cmid_p, Lb2) f32 VMEM scratch

    # ---- conv1 (GEMM, bf16 operands / f32 accum) + bias + ReLU --------------
    y1 = jnp.dot(w1_ref[...], p1_ref[...],
                 preferred_element_type=jnp.float32)        # (Cmid_p, C1H*C1W)
    y1 = jnp.maximum(y1 + b1_ref[...], 0.0)

    # ---- MaxPool2d(3, 2) #1 --------------------------------------------------
    y2 = _maxpool3s2(y1, C1H, C1W, C1W, P1H, P1W)           # (Cmid_p, P1H, P1W)

    # ---- zero-padded conv2 input, written straight into the VMEM scratch ----
    x2_ref[...] = jnp.zeros_like(x2_ref)
    for h in range(P1H):
        base = (h + Pd2) * Wp + Pd2
        x2_ref[:, base:base + P1W] = y2[:, h, :]
    x2 = x2_ref[...]

    # ---- conv2 im2col: ONE contiguous lane slice per (ky, kx) ---------------
    chunks = [x2[:, ky * Wp + kx: ky * Wp + kx + C2H * Wp]
              for ky in range(K2) for kx in range(K2)]
    patches = jnp.concatenate(chunks, axis=0).astype(jnp.bfloat16)  # (K2p, C2H*Wp)

    # ---- conv2 (GEMM) + bias + ReLU ------------------------------------------
    y3 = jnp.dot(w2_ref[...], patches,
                 preferred_element_type=jnp.float32)        # (Cout, C2H*Wp)
    y3 = jnp.maximum(y3 + b2_ref[...], 0.0)
    # columns w >= C2W of each padded row are never read by the pooling below.

    # ---- MaxPool2d(3, 2) #2 ---------------------------------------------------
    y4 = _maxpool3s2(y3, C2H, C2W, Wp, P2H, P2W)            # (Cout, P2H, P2W)

    # ---- AdaptiveAvgPool2d (exact PyTorch bin edges, non-uniform bins OK) ----
    bins = []
    for i in range(OH):
        hs, he = (i * P2H) // OH, ((i + 1) * P2H + OH - 1) // OH
        for j in range(OW):
            ws, we = (j * P2W) // OW, ((j + 1) * P2W + OW - 1) // OW
            blk = y4[:, hs:he, ws:we]
            s = jnp.sum(jnp.sum(blk, axis=2, keepdims=True), axis=1)  # (Cout,1)
            bins.append(s * (1.0 / ((he - hs) * (we - ws))))
    o_ref[...] = jnp.concatenate(bins, axis=1)              # (Cout, OH*OW)


# ---------------------------------------------------------------------------
# Parameters (deterministic, PyTorch-style uniform bounds)
# ---------------------------------------------------------------------------
def init_params(key, in_channels, out_channels, h_w):
    mid_channels = (in_channels + out_channels) // 2
    k1, k2 = h_w[0] * 2, 5
    kw1, kb1, kw2, kb2 = jax.random.split(key, 4)
    bound1 = 1.0 / math.sqrt(in_channels * k1 * k1)
    bound2 = 1.0 / math.sqrt(mid_channels * k2 * k2)
    return dict(
        w1=jax.random.uniform(kw1, (mid_channels, in_channels, k1, k1),
                              jnp.float32, -bound1, bound1),
        b1=jax.random.uniform(kb1, (mid_channels,), jnp.float32, -bound1, bound1),
        w2=jax.random.uniform(kw2, (out_channels, mid_channels, k2, k2),
                              jnp.float32, -bound2, bound2),
        b2=jax.random.uniform(kb2, (out_channels,), jnp.float32, -bound2, bound2),
    )


# ---------------------------------------------------------------------------
# One-time weight packing (hoisted out of the per-call forward)
# ---------------------------------------------------------------------------
def prepare_params(params):
    w1, b1, w2, b2 = params["w1"], params["b1"], params["w2"], params["b2"]
    Cmid, Cin, K1, _ = w1.shape
    Cout, _, K2, _ = w2.shape
    Cmid_p = _round_up(Cmid, 8)                       # sublane-align mid channels
    K1c = Cin * K1 * K1
    K1p = _round_up(K1c, 8)
    K2p = K2 * K2 * Cmid_p                            # always a multiple of 8

    w1f = jnp.zeros((Cmid_p, K1p), jnp.float32)
    w1f = w1f.at[:Cmid, :K1c].set(w1.reshape(Cmid, K1c).astype(jnp.float32))
    b1c = jnp.zeros((Cmid_p, 1), jnp.float32).at[:Cmid, 0].set(
        b1.astype(jnp.float32))

    w2t = jnp.transpose(w2, (0, 2, 3, 1)).astype(jnp.float32)  # (Cout,K2,K2,Cmid)
    w2t = jnp.pad(w2t, ((0, 0), (0, 0), (0, 0), (0, Cmid_p - Cmid)))
    w2f = w2t.reshape(Cout, K2p)
    b2c = b2.reshape(Cout, 1).astype(jnp.float32)

    packed = dict(w1=w1f.astype(jnp.bfloat16), b1=b1c,
                  w2=w2f.astype(jnp.bfloat16), b2=b2c)
    meta = (int(Cin), int(Cmid), int(Cmid_p), int(Cout),
            int(K1), int(K2), int(K1p), int(K2p))
    return packed, meta


# ---------------------------------------------------------------------------
# Forward (matches DownsampleCNN.forward)
# ---------------------------------------------------------------------------
@partial(jax.jit, static_argnums=(2, 3))
def downsample_cnn_forward(x_nchw, packed, h_w, meta):
    Cin, Cmid, Cmid_p, Cout, K1, K2, K1p, K2p = meta
    OH, OW = h_w
    S1, Pd1, Pd2 = 4, 2, 2
    B, Cin_x, H, W = x_nchw.shape
    assert Cin_x == Cin

    C1H = (H + 2 * Pd1 - K1) // S1 + 1
    C1W = (W + 2 * Pd1 - K1) // S1 + 1
    assert C1H >= 3 and C1W >= 3, "input too small for first MaxPool2d(3,2)"
    P1H, P1W = (C1H - 3) // 2 + 1, (C1W - 3) // 2 + 1
    C2H, C2W = P1H, P1W                   # conv2 is 'same' (k=5, p=2, s=1)
    assert C2H >= 3 and C2W >= 3, "feature map too small for second MaxPool2d(3,2)"
    assert K2 <= 2 * Pd2 + 1, "single-slice-per-(ky,kx) im2col requires k <= 2p+1"
    P2H, P2W = (C2H - 3) // 2 + 1, (C2W - 3) // 2 + 1

    M1 = C1H * C1W
    K1c = Cin * K1 * K1
    Wp = C2W + 2 * Pd2
    Hp = C2H + 2 * Pd2
    Lb2 = (Hp + 1) * Wp                   # one spare zero row keeps every
    assert (K2 - 1) * (Wp + 1) + C2H * Wp <= Lb2   # (ky,kx) slice in-bounds

    # ---- conv1 im2col in the wrapper (stride == kernel for this module, so
    #      the patch matrix has zero duplication) ------------------------------
    # TODO(synk): fold the stride-4 patch extraction into the kernel as well.
    x = x_nchw.astype(jnp.float32)
    xp = jnp.pad(x, ((0, 0), (0, 0), (Pd1, Pd1), (Pd1, Pd1)))
    slices = [xp[:, :, ky:ky + S1 * C1H:S1, kx:kx + S1 * C1W:S1]
              for ky in range(K1) for kx in range(K1)]
    p1 = jnp.stack(slices, axis=0)                  # (K1*K1, B, Cin, C1H, C1W)
    p1 = p1.transpose(1, 2, 0, 3, 4).reshape(B, K1c, M1)
    if K1p != K1c:
        p1 = jnp.pad(p1, ((0, 0), (0, K1p - K1c), (0, 0)))
    p1 = p1.astype(jnp.bfloat16)

    kfn = partial(_fused_kernel, C1H=C1H, C1W=C1W, P1H=P1H, P1W=P1W,
                  K2=K2, Pd2=Pd2, Wp=Wp, C2H=C2H, C2W=C2W,
                  P2H=P2H, P2W=P2W, OH=OH, OW=OW)

    flops = 2 * B * (Cmid_p * K1p * M1 + Cout * K2p * C2H * Wp)
    bytes_accessed = (p1.size * 2 + packed["w1"].size * 2
                      + packed["w2"].size * 2 + B * Cout * OH * OW * 4)

    out = pl.pallas_call(
        kfn,
        out_shape=jax.ShapeDtypeStruct((B, Cout, OH * OW), jnp.float32),
        grid=(B,),
        in_specs=[
            pl.BlockSpec((None, K1p, M1), lambda b: (b, 0, 0)),     # patches
            pl.BlockSpec((Cmid_p, K1p), lambda b: (0, 0)),          # w1 (resident)
            pl.BlockSpec((Cmid_p, 1), lambda b: (0, 0)),            # b1
            pl.BlockSpec((Cout, K2p), lambda b: (0, 0)),            # w2 (resident)
            pl.BlockSpec((Cout, 1), lambda b: (0, 0)),              # b2
        ],
        out_specs=pl.BlockSpec((None, Cout, OH * OW), lambda b: (b, 0, 0)),
        scratch_shapes=[pltpu.VMEM((Cmid_p, Lb2), jnp.float32)],
        compiler_params=pltpu.CompilerParams(
            dimension_semantics=("parallel",)),     # megacore split on v7x
        cost_estimate=pl.CostEstimate(flops=flops, transcendentals=0,
                                      bytes_accessed=bytes_accessed),
    )(p1, packed["w1"], packed["b1"], packed["w2"], packed["b2"])

    return out.reshape(B, Cout, OH, OW)


# ---------------------------------------------------------------------------
# Matching-precision (bf16 operands, f32 accum) XLA reference for self-check
# ---------------------------------------------------------------------------
def _reference_forward(x, params, h_w):
    w1, b1, w2, b2 = params["w1"], params["b1"], params["w2"], params["b2"]
    bf = jnp.bfloat16
    y = jax.lax.conv_general_dilated(
        x.astype(bf), w1.astype(bf), window_strides=(4, 4),
        padding=((2, 2), (2, 2)), dimension_numbers=("NCHW", "OIHW", "NCHW"),
        preferred_element_type=jnp.float32)
    y = jnp.maximum(y + b1[None, :, None, None], 0.0)
    y = jax.lax.reduce_window(y, -jnp.inf, jax.lax.max,
                              (1, 1, 3, 3), (1, 1, 2, 2), "VALID")
    y = jax.lax.conv_general_dilated(
        y.astype(bf), w2.astype(bf), window_strides=(1, 1),
        padding=((2, 2), (2, 2)), dimension_numbers=("NCHW", "OIHW", "NCHW"),
        preferred_element_type=jnp.float32)
    y = jnp.maximum(y + b2[None, :, None, None], 0.0)
    y = jax.lax.reduce_window(y, -jnp.inf, jax.lax.max,
                              (1, 1, 3, 3), (1, 1, 2, 2), "VALID")
    _, _, Hh, Ww = y.shape
    OH, OW = h_w
    rows = []
    for i in range(OH):
        hs, he = (i * Hh) // OH, ((i + 1) * Hh + OH - 1) // OH
        cols = []
        for j in range(OW):
            ws, we = (j * Ww) // OW, ((j + 1) * Ww + OW - 1) // OW
            cols.append(jnp.mean(y[:, :, hs:he, ws:we], axis=(2, 3)))
        rows.append(jnp.stack(cols, axis=-1))
    return jnp.stack(rows, axis=-2)                              # (B, C, OH, OW)


if __name__ == "__main__":
    key = jax.random.PRNGKey(0)
    k_x, k_p = jax.random.split(key)

    in_channels, out_channels, h_w = 4, 8, (2, 2)
    # 64x64 input -> conv1(k=4,s=4,p=2) 17x17 -> maxpool 8x8 -> conv2(k=5,p=2)
    # 8x8 -> maxpool 3x3 -> adaptive avg 2x2.  (The module itself needs the
    # spatial map to stay >= 3 before each MaxPool2d, so 16x16 would error.)
    x = jax.random.normal(k_x, (2, in_channels, 64, 64), jnp.float32)
    params = init_params(k_p, in_channels, out_channels, h_w)
    packed, meta = prepare_params(params)

    out = jax.block_until_ready(downsample_cnn_forward(x, packed, h_w, meta))
    assert out.shape == (2, out_channels, h_w[0], h_w[1]), out.shape
    assert bool(jnp.all(jnp.isfinite(out)))

    ref = _reference_forward(x, params, h_w)
    err = float(jnp.max(jnp.abs(out - ref)))
    assert err < 2e-2, f"mismatch vs matching-precision XLA reference: {err}"

    print("KERNEL_OK")
</pallas_src>

<mosaic_0001>
module attributes {stable_mosaic.version = 11 : i64} {
  func.func @_fused_kernel(%arg0: i32, %arg1: memref<1x64x289xbf16, #tpu.memory_space<vmem>>, %arg2: memref<8x64xbf16, #tpu.memory_space<vmem>>, %arg3: memref<8x1xf32, #tpu.memory_space<vmem>>, %arg4: memref<8x200xbf16, #tpu.memory_space<vmem>>, %arg5: memref<8x1xf32, #tpu.memory_space<vmem>>, %arg6: memref<1x8x4xf32, #tpu.memory_space<vmem>>, %arg7: memref<8x156xf32, #tpu.memory_space<vmem>>) attributes {dimension_semantics = [#tpu.dimension_semantics<parallel>], iteration_bounds = array<i64: 2>, scalar_prefetch = 0 : i64, scratch_operands = 1 : i64, tpu.core_type = #tpu.core_type<tc>, window_params = [{transform_indices = @transform_0, window_bounds = array<i64: 1, 64, 289>}, {pipeline_mode = #tpu.pipeline_mode<synchronous>, transform_indices = @transform_1, window_bounds = array<i64: 8, 64>}, {pipeline_mode = #tpu.pipeline_mode<synchronous>, transform_indices = @transform_2, window_bounds = array<i64: 8, 1>}, {pipeline_mode = #tpu.pipeline_mode<synchronous>, transform_indices = @transform_3, window_bounds = array<i64: 8, 200>}, {pipeline_mode = #tpu.pipeline_mode<synchronous>, transform_indices = @transform_4, window_bounds = array<i64: 8, 1>}, {transform_indices = @transform_5, window_bounds = array<i64: 1, 8, 4>}]} {
    %c0 = arith.constant 0 : index
    %c0_0 = arith.constant 0 : index
    %0 = vector.load %arg2[%c0, %c0_0] : memref<8x64xbf16, #tpu.memory_space<vmem>>, vector<8x64xbf16>
    %c0_1 = arith.constant 0 : index
    %c0_2 = arith.constant 0 : index
    %c0_3 = arith.constant 0 : index
    %1 = vector.load %arg1[%c0_1, %c0_2, %c0_3] : memref<1x64x289xbf16, #tpu.memory_space<vmem>>, vector<1x64x289xbf16>
    %2 = vector.shape_cast %1 : vector<1x64x289xbf16> to vector<64x289xbf16>
    %cst = arith.constant dense<0.000000e+00> : vector<8x289xf32>
    %3 = tpu.matmul %0, %2, %cst {dimension_numbers = #tpu.dot_dimension_numbers<[1], [0], [0], [1], [0, 0, 1, 1], [], []>} : vector<8x64xbf16>, vector<64x289xbf16>, vector<8x289xf32> -> vector<8x289xf32>
    %c0_4 = arith.constant 0 : index
    %c0_5 = arith.constant 0 : index
    %4 = vector.load %arg3[%c0_4, %c0_5] : memref<8x1xf32, #tpu.memory_space<vmem>>, vector<8x1xf32>
    %5 = vector.broadcast %4 : vector<8x1xf32> to vector<8x289xf32>
    %6 = arith.addf %3, %5 : vector<8x289xf32>
    %cst_6 = arith.constant 0.000000e+00 : f32
    %7 = vector.broadcast %cst_6 : f32 to vector<8x289xf32>
    %8 = arith.maximumf %6, %7 : vector<8x289xf32>
    %9 = vector.extract_strided_slice %8 {offsets = [0, 0], sizes = [8, 255], strides = [1, 1]} : vector<8x289xf32> to vector<8x255xf32>
    %10 = vector.extract_strided_slice %8 {offsets = [0, 17], sizes = [8, 255], strides = [1, 1]} : vector<8x289xf32> to vector<8x255xf32>
    %11 = arith.maximumf %9, %10 : vector<8x255xf32>
    %12 = vector.extract_strided_slice %8 {offsets = [0, 34], sizes = [8, 255], strides = [1, 1]} : vector<8x289xf32> to vector<8x255xf32>
    %13 = arith.maximumf %11, %12 : vector<8x255xf32>
    %14 = vector.extract_strided_slice %13 {offsets = [0, 0], sizes = [8, 253], strides = [1, 1]} : vector<8x255xf32> to vector<8x253xf32>
    %15 = vector.extract_strided_slice %13 {offsets = [0, 1], sizes = [8, 253], strides = [1, 1]} : vector<8x255xf32> to vector<8x253xf32>
    %16 = arith.maximumf %14, %15 : vector<8x253xf32>
    %17 = vector.extract_strided_slice %13 {offsets = [0, 2], sizes = [8, 253], strides = [1, 1]} : vector<8x255xf32> to vector<8x253xf32>
    %18 = arith.maximumf %16, %17 : vector<8x253xf32>
    %19 = vector.extract_strided_slice %18 {offsets = [0, 0], sizes = [8, 15], strides = [1, 1]} : vector<8x253xf32> to vector<8x15xf32>
    %20 = vector.extract_strided_slice %18 {offsets = [0, 34], sizes = [8, 15], strides = [1, 1]} : vector<8x253xf32> to vector<8x15xf32>
    %21 = vector.extract_strided_slice %18 {offsets = [0, 68], sizes = [8, 15], strides = [1, 1]} : vector<8x253xf32> to vector<8x15xf32>
    %22 = vector.extract_strided_slice %18 {offsets = [0, 102], sizes = [8, 15], strides = [1, 1]} : vector<8x253xf32> to vector<8x15xf32>
    %23 = vector.extract_strided_slice %18 {offsets = [0, 136], sizes = [8, 15], strides = [1, 1]} : vector<8x253xf32> to vector<8x15xf32>
    %24 = vector.extract_strided_slice %18 {offsets = [0, 170], sizes = [8, 15], strides = [1, 1]} : vector<8x253xf32> to vector<8x15xf32>
    %25 = vector.extract_strided_slice %18 {offsets = [0, 204], sizes = [8, 15], strides = [1, 1]} : vector<8x253xf32> to vector<8x15xf32>
    %26 = vector.extract_strided_slice %18 {offsets = [0, 238], sizes = [8, 15], strides = [1, 1]} : vector<8x253xf32> to vector<8x15xf32>
    %27 = vector.shape_cast %19 : vector<8x15xf32> to vector<8x1x15xf32>
    %28 = vector.shape_cast %20 : vector<8x15xf32> to vector<8x1x15xf32>
    %29 = vector.shape_cast %21 : vector<8x15xf32> to vector<8x1x15xf32>
    %30 = vector.shape_cast %22 : vector<8x15xf32> to vector<8x1x15xf32>
    %31 = vector.shape_cast %23 : vector<8x15xf32> to vector<8x1x15xf32>
    %32 = vector.shape_cast %24 : vector<8x15xf32> to vector<8x1x15xf32>
    %33 = vector.shape_cast %25 : vector<8x15xf32> to vector<8x1x15xf32>
    %34 = vector.shape_cast %26 : vector<8x15xf32> to vector<8x1x15xf32>
    %35 = tpu.concatenate %27, %28, %29, %30, %31, %32, %33, %34 in 1 : vector<8x1x15xf32>, vector<8x1x15xf32>, vector<8x1x15xf32>, vector<8x1x15xf32>, vector<8x1x15xf32>, vector<8x1x15xf32>, vector<8x1x15xf32>, vector<8x1x15xf32> -> vector<8x8x15xf32>
    %36 = vector.extract_strided_slice %35 {offsets = [0, 0, 0], sizes = [8, 8, 1], strides = [1, 1, 1]} : vector<8x8x15xf32> to vector<8x8x1xf32>
    %37 = vector.extract_strided_slice %35 {offsets = [0, 0, 2], sizes = [8, 8, 1], strides = [1, 1, 1]} : vector<8x8x15xf32> to vector<8x8x1xf32>
    %38 = vector.extract_strided_slice %35 {offsets = [0, 0, 4], sizes = [8, 8, 1], strides = [1, 1, 1]} : vector<8x8x15xf32> to vector<8x8x1xf32>
    %39 = vector.extract_strided_slice %35 {offsets = [0, 0, 6], sizes = [8, 8, 1], strides = [1, 1, 1]} : vector<8x8x15xf32> to vector<8x8x1xf32>
    %40 = vector.extract_strided_slice %35 {offsets = [0, 0, 8], sizes = [8, 8, 1], strides = [1, 1, 1]} : vector<8x8x15xf32> to vector<8x8x1xf32>
    %41 = vector.extract_strided_slice %35 {offsets = [0, 0, 10], sizes = [8, 8, 1], strides = [1, 1, 1]} : vector<8x8x15xf32> to vector<8x8x1xf32>
    %42 = vector.extract_strided_slice %35 {offsets = [0, 0, 12], sizes = [8, 8, 1], strides = [1, 1, 1]} : vector<8x8x15xf32> to vector<8x8x1xf32>
    %43 = vector.extract_strided_slice %35 {offsets = [0, 0, 14], sizes = [8, 8, 1], strides = [1, 1, 1]} : vector<8x8x15xf32> to vector<8x8x1xf32>
    %44 = tpu.concatenate %36, %37, %38, %39, %40, %41, %42, %43 in 2 : vector<8x8x1xf32>, vector<8x8x1xf32>, vector<8x8x1xf32>, vector<8x8x1xf32>, vector<8x8x1xf32>, vector<8x8x1xf32>, vector<8x8x1xf32>, vector<8x8x1xf32> -> vector<8x8x8xf32>
    %cst_7 = arith.constant 0.000000e+00 : f32
    %45 = vector.broadcast %cst_7 : f32 to vector<8x156xf32>
    %c0_8 = arith.constant 0 : index
    %c0_9 = arith.constant 0 : index
    %46 = vector.load %arg7[%c0_8, %c0_9] : memref<8x156xf32, #tpu.memory_space<vmem>>, vector<8x156xf32>
    tpu.vector_store %arg7[%c0_8, %c0_9], %45 {strides = array<i32>} : memref<8x156xf32, #tpu.memory_space<vmem>>, vector<8x156xf32>,
    %47 = vector.extract_strided_slice %44 {offsets = [0, 0, 0], sizes = [8, 1, 8], strides = [1, 1, 1]} : vector<8x8x8xf32> to vector<8x1x8xf32>
    %48 = vector.shape_cast %47 : vector<8x1x8xf32> to vector<8x8xf32>
    %c0_10 = arith.constant 0 : index
    %c26 = arith.constant 26 : index
    %49 = vector.load %arg7[%c0_10, %c26] : memref<8x156xf32, #tpu.memory_space<vmem>>, vector<8x8xf32>
    tpu.vector_store %arg7[%c0_10, %c26], %48 {strides = array<i32>} : memref<8x156xf32, #tpu.memory_space<vmem>>, vector<8x8xf32>,
    %50 = vector.extract_strided_slice %44 {offsets = [0, 1, 0], sizes = [8, 1, 8], strides = [1, 1, 1]} : vector<8x8x8xf32> to vector<8x1x8xf32>
    %51 = vector.shape_cast %50 : vector<8x1x8xf32> to vector<8x8xf32>
    %c0_11 = arith.constant 0 : index
    %c38 = arith.constant 38 : index
    %52 = vector.load %arg7[%c0_11, %c38] : memref<8x156xf32, #tpu.memory_space<vmem>>, vector<8x8xf32>
    tpu.vector_store %arg7[%c0_11, %c38], %51 {strides = array<i32>} : memref<8x156xf32, #tpu.memory_space<vmem>>, vector<8x8xf32>,
    %53 = vector.extract_strided_slice %44 {offsets = [0, 2, 0], sizes = [8, 1, 8], strides = [1, 1, 1]} : vector<8x8x8xf32> to vector<8x1x8xf32>
    %54 = vector.shape_cast %53 : vector<8x1x8xf32> to vector<8x8xf32>
    %c0_12 = arith.constant 0 : index
    %c50 = arith.constant 50 : index
    %55 = vector.load %arg7[%c0_12, %c50] : memref<8x156xf32, #tpu.memory_space<vmem>>, vector<8x8xf32>
    tpu.vector_store %arg7[%c0_12, %c50], %54 {strides = array<i32>} : memref<8x156xf32, #tpu.memory_space<vmem>>, vector<8x8xf32>,
    %56 = vector.extract_strided_slice %44 {offsets = [0, 3, 0], sizes = [8, 1, 8], strides = [1, 1, 1]} : vector<8x8x8xf32> to vector<8x1x8xf32>
    %57 = vector.shape_cast %56 : vector<8x1x8xf32> to vector<8x8xf32>
    %c0_13 = arith.constant 0 : index
    %c62 = arith.constant 62 : index
    %58 = vector.load %arg7[%c0_13, %c62] : memref<8x156xf32, #tpu.memory_space<vmem>>, vector<8x8xf32>
    tpu.vector_store %arg7[%c0_13, %c62], %57 {strides = array<i32>} : memref<8x156xf32, #tpu.memory_space<vmem>>, vector<8x8xf32>,
    %59 = vector.extract_strided_slice %44 {offsets = [0, 4, 0], sizes = [8, 1, 8], strides = [1, 1, 1]} : vector<8x8x8xf32> to vector<8x1x8xf32>
    %60 = vector.shape_cast %59 : vector<8x1x8xf32> to vector<8x8xf32>
    %c0_14 = arith.constant 0 : index
    %c74 = arith.constant 74 : index
    %61 = vector.load %arg7[%c0_14, %c74] : memref<8x156xf32, #tpu.memory_space<vmem>>, vector<8x8xf32>
    tpu.vector_store %arg7[%c0_14, %c74], %60 {strides = array<i32>} : memref<8x156xf32, #tpu.memory_space<vmem>>, vector<8x8xf32>,
    %62 = vector.extract_strided_slice %44 {offsets = [0, 5, 0], sizes = [8, 1, 8], strides = [1, 1, 1]} : vector<8x8x8xf32> to vector<8x1x8xf32>
    %63 = vector.shape_cast %62 : vector<8x1x8xf32> to vector<8x8xf32>
    %c0_15 = arith.constant 0 : index
    %c86 = arith.constant 86 : index
    %64 = vector.load %arg7[%c0_15, %c86] : memref<8x156xf32, #tpu.memory_space<vmem>>, vector<8x8xf32>
    tpu.vector_store %arg7[%c0_15, %c86], %63 {strides = array<i32>} : memref<8x156xf32, #tpu.memory_space<vmem>>, vector<8x8xf32>,
    %65 = vector.extract_strided_slice %44 {offsets = [0, 6, 0], sizes = [8, 1, 8], strides = [1, 1, 1]} : vector<8x8x8xf32> to vector<8x1x8xf32>
    %66 = vector.shape_cast %65 : vector<8x1x8xf32> to vector<8x8xf32>
    %c0_16 = arith.constant 0 : index
    %c98 = arith.constant 98 : index
    %67 = vector.load %arg7[%c0_16, %c98] : memref<8x156xf32, #tpu.memory_space<vmem>>, vector<8x8xf32>
    tpu.vector_store %arg7[%c0_16, %c98], %66 {strides = array<i32>} : memref<8x156xf32, #tpu.memory_space<vmem>>, vector<8x8xf32>,
    %68 = vector.extract_strided_slice %44 {offsets = [0, 7, 0], sizes = [8, 1, 8], strides = [1, 1, 1]} : vector<8x8x8xf32> to vector<8x1x8xf32>
    %69 = vector.shape_cast %68 : vector<8x1x8xf32> to vector<8x8xf32>
    %c0_17 = arith.constant 0 : index
    %c110 = arith.constant 110 : index
    %70 = vector.load %arg7[%c0_17, %c110] : memref<8x156xf32, #tpu.memory_space<vmem>>, vector<8x8xf32>
    tpu.vector_store %arg7[%c0_17, %c110], %69 {strides = array<i32>} : memref<8x156xf32, #tpu.memory_space<vmem>>, vector<8x8xf32>,
    %c0_18 = arith.constant 0 : index
    %c0_19 = arith.constant 0 : index
    %71 = vector.load %arg7[%c0_18, %c0_19] : memref<8x156xf32, #tpu.memory_space<vmem>>, vector<8x156xf32>
    %72 = vector.extract_strided_slice %71 {offsets = [0, 0], sizes = [8, 96], strides = [1, 1]} : vector<8x156xf32> to vector<8x96xf32>
    %73 = vector.extract_strided_slice %71 {offsets = [0, 1], sizes = [8, 96], strides = [1, 1]} : vector<8x156xf32> to vector<8x96xf32>
    %74 = vector.extract_strided_slice %71 {offsets = [0, 2], sizes = [8, 96], strides = [1, 1]} : vector<8x156xf32> to vector<8x96xf32>
    %75 = vector.extract_strided_slice %71 {offsets = [0, 3], sizes = [8, 96], strides = [1, 1]} : vector<8x156xf32> to vector<8x96xf32>
    %76 = vector.extract_strided_slice %71 {offsets = [0, 4], sizes = [8, 96], strides = [1, 1]} : vector<8x156xf32> to vector<8x96xf32>
    %77 = vector.extract_strided_slice %71 {offsets = [0, 12], sizes = [8, 96], strides = [1, 1]} : vector<8x156xf32> to vector<8x96xf32>
    %78 = vector.extract_strided_slice %71 {offsets = [0, 13], sizes = [8, 96], strides = [1, 1]} : vector<8x156xf32> to vector<8x96xf32>
    %79 = vector.extract_strided_slice %71 {offsets = [0, 14], sizes = [8, 96], strides = [1, 1]} : vector<8x156xf32> to vector<8x96xf32>
    %80 = vector.extract_strided_slice %71 {offsets = [0, 15], sizes = [8, 96], strides = [1, 1]} : vector<8x156xf32> to vector<8x96xf32>
    %81 = vector.extract_strided_slice %71 {offsets = [0, 16], sizes = [8, 96], strides = [1, 1]} : vector<8x156xf32> to vector<8x96xf32>
    %82 = vector.extract_strided_slice %71 {offsets = [0, 24], sizes = [8, 96], strides = [1, 1]} : vector<8x156xf32> to vector<8x96xf32>
    %83 = vector.extract_strided_slice %71 {offsets = [0, 25], sizes = [8, 96], strides = [1, 1]} : vector<8x156xf32> to vector<8x96xf32>
    %84 = vector.extract_strided_slice %71 {offsets = [0, 26], sizes = [8, 96], strides = [1, 1]} : vector<8x156xf32> to vector<8x96xf32>
    %85 = vector.extract_strided_slice %71 {offsets = [0, 27], sizes = [8, 96], strides = [1, 1]} : vector<8x156xf32> to vector<8x96xf32>
    %86 = vector.extract_strided_slice %71 {offsets = [0, 28], sizes = [8, 96], strides = [1, 1]} : vector<8x156xf32> to vector<8x96xf32>
    %87 = vector.extract_strided_slice %71 {offsets = [0, 36], sizes = [8, 96], strides = [1, 1]} : vector<8x156xf32> to vector<8x96xf32>
    %88 = vector.extract_strided_slice %71 {offsets = [0, 37], sizes = [8, 96], strides = [1, 1]} : vector<8x156xf32> to vector<8x96xf32>
    %89 = vector.extract_strided_slice %71 {offsets = [0, 38], sizes = [8, 96], strides = [1, 1]} : vector<8x156xf32> to vector<8x96xf32>
    %90 = vector.extract_strided_slice %71 {offsets = [0, 39], sizes = [8, 96], strides = [1, 1]} : vector<8x156xf32> to vector<8x96xf32>
    %91 = vector.extract_strided_slice %71 {offsets = [0, 40], sizes = [8, 96], strides = [1, 1]} : vector<8x156xf32> to vector<8x96xf32>
    %92 = vector.extract_strided_slice %71 {offsets = [0, 48], sizes = [8, 96], strides = [1, 1]} : vector<8x156xf32> to vector<8x96xf32>
    %93 = vector.extract_strided_slice %71 {offsets = [0, 49], sizes = [8, 96], strides = [1, 1]} : vector<8x156xf32> to vector<8x96xf32>
    %94 = vector.extract_strided_slice %71 {offsets = [0, 50], sizes = [8, 96], strides = [1, 1]} : vector<8x156xf32> to vector<8x96xf32>
    %95 = vector.extract_strided_slice %71 {offsets = [0, 51], sizes = [8, 96], strides = [1, 1]} : vector<8x156xf32> to vector<8x96xf32>
    %96 = vector.extract_strided_slice %71 {offsets = [0, 52], sizes = [8, 96], strides = [1, 1]} : vector<8x156xf32> to vector<8x96xf32>
    %97 = tpu.concatenate %72, %73, %74, %75, %76, %77, %78, %79, %80, %81, %82, %83, %84, %85, %86, %87 in 0 : vector<8x96xf32>, vector<8x96xf32>, vector<8x96xf32>, vector<8x96xf32>, vector<8x96xf32>, vector<8x96xf32>, vector<8x96xf32>, vector<8x96xf32>, vector<8x96xf32>, vector<8x96xf32>, vector<8x96xf32>, vector<8x96xf32>, vector<8x96xf32>, vector<8x96xf32>, vector<8x96xf32>, vector<8x96xf32> -> vector<128x96xf32>
    %98 = tpu.concatenate %88, %89, %90, %91, %92, %93, %94, %95, %96 in 0 : vector<8x96xf32>, vector<8x96xf32>, vector<8x96xf32>, vector<8x96xf32>, vector<8x96xf32>, vector<8x96xf32>, vector<8x96xf32>, vector<8x96xf32>, vector<8x96xf32> -> vector<72x96xf32>
    %99 = tpu.concatenate %97, %98 in 0 : vector<128x96xf32>, vector<72x96xf32> -> vector<200x96xf32>
    %100 = arith.truncf %99 : vector<200x96xf32> to vector<200x96xbf16>
    %c0_20 = arith.constant 0 : index
    %c0_21 = arith.constant 0 : index
    %101 = vector.load %arg4[%c0_20, %c0_21] : memref<8x200xbf16, #tpu.memory_space<vmem>>, vector<8x200xbf16>
    %cst_22 = arith.constant dense<0.000000e+00> : vector<8x96xf32>
    %102 = tpu.matmul %101, %100, %cst_22 {dimension_numbers = #tpu.dot_dimension_numbers<[1], [0], [0], [1], [0, 0, 1, 1], [], []>} : vector<8x200xbf16>, vector<200x96xbf16>, vector<8x96xf32> -> vector<8x96xf32>
    %c0_23 = arith.constant 0 : index
    %c0_24 = arith.constant 0 : index
    %103 = vector.load %arg5[%c0_23, %c0_24] : memref<8x1xf32, #tpu.memory_space<vmem>>, vector<8x1xf32>
    %104 = vector.broadcast %103 : vector<8x1xf32> to vector<8x96xf32>
    %105 = arith.addf %102, %104 : vector<8x96xf32>
    %cst_25 = arith.constant 0.000000e+00 : f32
    %106 = vector.broadcast %cst_25 : f32 to vector<8x96xf32>
    %107 = arith.maximumf %105, %106 : vector<8x96xf32>
    %108 = vector.extract_strided_slice %107 {offsets = [0, 0], sizes = [8, 72], strides = [1, 1]} : vector<8x96xf32> to vector<8x72xf32>
    %109 = vector.extract_strided_slice %107 {offsets = [0, 12], sizes = [8, 72], strides = [1, 1]} : vector<8x96xf32> to vector<8x72xf32>
    %110 = arith.maximumf %108, %109 : vector<8x72xf32>
    %111 = vector.extract_strided_slice %107 {offsets = [0, 24], sizes = [8, 72], strides = [1, 1]} : vector<8x96xf32> to vector<8x72xf32>
    %112 = arith.maximumf %110, %111 : vector<8x72xf32>
    %113 = vector.extract_strided_slice %112 {offsets = [0, 0], sizes = [8, 70], strides = [1, 1]} : vector<8x72xf32> to vector<8x70xf32>
    %114 = vector.extract_strided_slice %112 {offsets = [0, 1], sizes = [8, 70], strides = [1, 1]} : vector<8x72xf32> to vector<8x70xf32>
    %115 = arith.maximumf %113, %114 : vector<8x70xf32>
    %116 = vector.extract_strided_slice %112 {offsets = [0, 2], sizes = [8, 70], strides = [1, 1]} : vector<8x72xf32> to vector<8x70xf32>
    %117 = arith.maximumf %115, %116 : vector<8x70xf32>
    %118 = vector.extract_strided_slice %117 {offsets = [0, 0], sizes = [8, 5], strides = [1, 1]} : vector<8x70xf32> to vector<8x5xf32>
    %119 = vector.extract_strided_slice %117 {offsets = [0, 24], sizes = [8, 5], strides = [1, 1]} : vector<8x70xf32> to vector<8x5xf32>
    %120 = vector.extract_strided_slice %117 {offsets = [0, 48], sizes = [8, 5], strides = [1, 1]} : vector<8x70xf32> to vector<8x5xf32>
    %121 = vector.shape_cast %118 : vector<8x5xf32> to vector<8x1x5xf32>
    %122 = vector.shape_cast %119 : vector<8x5xf32> to vector<8x1x5xf32>
    %123 = vector.shape_cast %120 : vector<8x5xf32> to vector<8x1x5xf32>
    %124 = tpu.concatenate %121, %122, %123 in 1 : vector<8x1x5xf32>, vector<8x1x5xf32>, vector<8x1x5xf32> -> vector<8x3x5xf32>
    %125 = vector.extract_strided_slice %124 {offsets = [0, 0, 0], sizes = [8, 3, 1], strides = [1, 1, 1]} : vector<8x3x5xf32> to vector<8x3x1xf32>
    %126 = vector.extract_strided_slice %124 {offsets = [0, 0, 2], sizes = [8, 3, 1], strides = [1, 1, 1]} : vector<8x3x5xf32> to vector<8x3x1xf32>
    %127 = vector.extract_strided_slice %124 {offsets = [0, 0, 4], sizes = [8, 3, 1], strides = [1, 1, 1]} : vector<8x3x5xf32> to vector<8x3x1xf32>
    %128 = tpu.concatenate %125, %126, %127 in 2 : vector<8x3x1xf32>, vector<8x3x1xf32>, vector<8x3x1xf32> -> vector<8x3x3xf32>
    %129 = vector.extract_strided_slice %128 {offsets = [0, 0, 0], sizes = [8, 2, 2], strides = [1, 1, 1]} : vector<8x3x3xf32> to vector<8x2x2xf32>
    %cst_26 = arith.constant dense<0.000000e+00> : vector<8x2xf32>
    %130 = vector.multi_reduction <add>, %129, %cst_26 [2] : vector<8x2x2xf32> to vector<8x2xf32>
    %131 = vector.shape_cast %130 : vector<8x2xf32> to vector<8x2x1xf32>
    %cst_27 = arith.constant dense<0.000000e+00> : vector<8x1xf32>
    %132 = vector.multi_reduction <add>, %131, %cst_27 [1] : vector<8x2x1xf32> to vector<8x1xf32>
    %cst_28 = arith.constant 2.500000e-01 : f32
    %133 = vector.broadcast %cst_28 : f32 to vector<8x1xf32>
    %134 = arith.mulf %132, %133 : vector<8x1xf32>
    %135 = vector.extract_strided_slice %128 {offsets = [0, 0, 1], sizes = [8, 2, 2], strides = [1, 1, 1]} : vector<8x3x3xf32> to vector<8x2x2xf32>
    %cst_29 = arith.constant dense<0.000000e+00> : vector<8x2xf32>
    %136 = vector.multi_reduction <add>, %135, %cst_29 [2] : vector<8x2x2xf32> to vector<8x2xf32>
    %137 = vector.shape_cast %136 : vector<8x2xf32> to vector<8x2x1xf32>
    %cst_30 = arith.constant dense<0.000000e+00> : vector<8x1xf32>
    %138 = vector.multi_reduction <add>, %137, %cst_30 [1] : vector<8x2x1xf32> to vector<8x1xf32>
    %cst_31 = arith.constant 2.500000e-01 : f32
    %139 = vector.broadcast %cst_31 : f32 to vector<8x1xf32>
    %140 = arith.mulf %138, %139 : vector<8x1xf32>
    %141 = vector.extract_strided_slice %128 {offsets = [0, 1, 0], sizes = [8, 2, 2], strides = [1, 1, 1]} : vector<8x3x3xf32> to vector<8x2x2xf32>
    %cst_32 = arith.constant dense<0.000000e+00> : vector<8x2xf32>
    %142 = vector.multi_reduction <add>, %141, %cst_32 [2] : vector<8x2x2xf32> to vector<8x2xf32>
    %143 = vector.shape_cast %142 : vector<8x2xf32> to vector<8x2x1xf32>
    %cst_33 = arith.constant dense<0.000000e+00> : vector<8x1xf32>
    %144 = vector.multi_reduction <add>, %143, %cst_33 [1] : vector<8x2x1xf32> to vector<8x1xf32>
    %cst_34 = arith.constant 2.500000e-01 : f32
    %145 = vector.broadcast %cst_34 : f32 to vector<8x1xf32>
    %146 = arith.mulf %144, %145 : vector<8x1xf32>
    %147 = vector.extract_strided_slice %128 {offsets = [0, 1, 1], sizes = [8, 2, 2], strides = [1, 1, 1]} : vector<8x3x3xf32> to vector<8x2x2xf32>
    %cst_35 = arith.constant dense<0.000000e+00> : vector<8x2xf32>
    %148 = vector.multi_reduction <add>, %147, %cst_35 [2] : vector<8x2x2xf32> to vector<8x2xf32>
    %149 = vector.shape_cast %148 : vector<8x2xf32> to vector<8x2x1xf32>
    %cst_36 = arith.constant dense<0.000000e+00> : vector<8x1xf32>
    %150 = vector.multi_reduction <add>, %149, %cst_36 [1] : vector<8x2x1xf32> to vector<8x1xf32>
    %cst_37 = arith.constant 2.500000e-01 : f32
    %151 = vector.broadcast %cst_37 : f32 to vector<8x1xf32>
    %152 = arith.mulf %150, %151 : vector<8x1xf32>
    %153 = tpu.concatenate %134, %140, %146, %152 in 1 : vector<8x1xf32>, vector<8x1xf32>, vector<8x1xf32>, vector<8x1xf32> -> vector<8x4xf32>
    %c0_38 = arith.constant 0 : index
    %c0_39 = arith.constant 0 : index
    %c0_40 = arith.constant 0 : index
    %154 = vector.load %arg6[%c0_38, %c0_39, %c0_40] : memref<1x8x4xf32, #tpu.memory_space<vmem>>, vector<1x8x4xf32>
    %155 = vector.shape_cast %154 : vector<1x8x4xf32> to vector<8x4xf32>
    %156 = vector.shape_cast %153 : vector<8x4xf32> to vector<1x8x4xf32>
    tpu.vector_store %arg6[%c0_38, %c0_39, %c0_40], %156 {strides = array<i32>} : memref<1x8x4xf32, #tpu.memory_space<vmem>>, vector<1x8x4xf32>,
    return
  }
  func.func @transform_0(%arg0: i32) -> (i32, i32, i32) {
    %c0_i32 = arith.constant 0 : i32
    %c0_i32_0 = arith.constant 0 : i32
    %c0_i32_1 = arith.constant 0 : i32
    return %arg0, %c0_i32, %c0_i32_0 : i32, i32, i32
  }
  func.func @transform_1(%arg0: i32) -> (i32, i32) {
    %c0_i32 = arith.constant 0 : i32
    %c0_i32_0 = arith.constant 0 : i32
    %c0_i32_1 = arith.constant 0 : i32
    return %c0_i32, %c0_i32_0 : i32, i32
  }
  func.func @transform_2(%arg0: i32) -> (i32, i32) {
    %c0_i32 = arith.constant 0 : i32
    %c0_i32_0 = arith.constant 0 : i32
    %c0_i32_1 = arith.constant 0 : i32
    return %c0_i32, %c0_i32_0 : i32, i32
  }
  func.func @transform_3(%arg0: i32) -> (i32, i32) {
    %c0_i32 = arith.constant 0 : i32
    %c0_i32_0 = arith.constant 0 : i32
    %c0_i32_1 = arith.constant 0 : i32
    return %c0_i32, %c0_i32_0 : i32, i32
  }
  func.func @transform_4(%arg0: i32) -> (i32, i32) {
    %c0_i32 = arith.constant 0 : i32
    %c0_i32_0 = arith.constant 0 : i32
    %c0_i32_1 = arith.constant 0 : i32
    return %c0_i32, %c0_i32_0 : i32, i32
  }
  func.func @transform_5(%arg0: i32) -> (i32, i32, i32) {
    %c0_i32 = arith.constant 0 : i32
    %c0_i32_0 = arith.constant 0 : i32
    %c0_i32_1 = arith.constant 0 : i32
    return %arg0, %c0_i32, %c0_i32_0 : i32, i32, i32
  }
}

</mosaic_0001>

<llo_original>
// kernel: downsample_cnn_forward.1
$region0: #{downsample_cnn_forward.1}
  #allocation0 [shape = 'u32[]', space=smem, size = 0x4, offset = 0x4, fixed_abs, tag = 'smem constant byte address 0x4 - core index']
  #allocation1 [shape = 'u32[144,128]{1,0:T(1,128)}', space=vmem, size = 0x12000, scoped, tag = 'internal scratch']
  #allocation2 [shape = 'f32[8,156]{1,0:T(8,128)}', space=vmem, size = 0x2000, scoped, tag = 'scratch operand']
  %s0 = inlined_call_operand.vmem [shape: bf16[2,64,289], index: 0, kind: input, shape index: {}]
  %s1 = inlined_call_operand.vmem [shape: bf16[8,64], index: 1, kind: input, shape index: {}]
  %s2 = inlined_call_operand.vmem [shape: f32[8,1], index: 2, kind: input, shape index: {}]
  %s3 = inlined_call_operand.vmem [shape: bf16[8,200], index: 3, kind: input, shape index: {}]
  %s4 = inlined_call_operand.vmem [shape: f32[8,1], index: 4, kind: input, shape index: {}]
  %s5 = inlined_call_operand.vmem [shape: f32[2,8,4], index: 5, kind: output, shape index: {}]
  %s6 = sld [smem:[#allocation0]]
  $region53: #{downsample_cnn_forward.1} parent=0
    _
  %s8 = ssub.s32 1, %s6
  %s9 = scalar_select 0, %s8, %s6
  loop: start=0, step=1, limit=4
  $region2: #{downsample_cnn_forward.1} parent=0 // loop_pre_header
    _
  $region3: #{downsample_cnn_forward.1} parent=0 // loop_header
    %s11 = sphi 0, %s15
    %p12 = scmp.ge.s32.totalorder %s11, 4
    %s21 = sphi 0, %s23
    %s24 = sphi 0, %s21
    %s25 = sphi 0, %s24
    %s41 = sphi 0, %s25
    %s45 = sphi 0, %s45
    %s47 = sphi 0, %s45
    %s48 = sphi 0, %s47
    %s62 = sphi 0, %s48
    %s66 = sphi 0, %s66
    %s68 = sphi 0, %s66
    %s69 = sphi 0, %s68
    %s83 = sphi 0, %s69
    %s87 = sphi 0, %s87
    %s89 = sphi 0, %s87
    %s90 = sphi 0, %s89
    %s104 = sphi 0, %s90
    %s108 = sphi 0, %s108
    %s110 = sphi 0, %s108
    %s111 = sphi 0, %s110
    %s125 = sphi 0, %s111
    %s131 = sphi 0, %s133
    %s134 = sphi 0, %s131
    %s135 = sphi 0, %s134
    %s151 = sphi 0, %s135
  $region4: #{downsample_cnn_forward.1} parent=0 // loop_header_branch
    %14 = sbr.rel (%p12) target = $region8
  $region5: #{downsample_cnn_forward.1} parent=0 // loop_body
    %s16 = ssub.s32 %s11, 1
    %s17 = ssub.s32 %s11, 2
    %s18 = sadd.s32 %s11, 1
    %s19 = ssub.s32 %s11, %s18
    %p20 = scmp.eq.s32.totalorder %s19, 0
    %s22 = sadd.s32 %s21, 1
    %s23 = scalar_select %p20, %s21, %s22
    %p26 = pneg %p20
    %p27 = scmp.eq.s32.totalorder %s11, 1
    %p28 = por %p26, %p27
    %p29 = scmp.ne.s32.totalorder %s21, %s24
    %p30 = scmp.eq.s32.totalorder %s11, 0
    %p31 = por %p29, %p30
    %p32 = scmp.ne.s32.totalorder %s21, %s24
    %p33 = scmp.eq.s32.totalorder %s16, 1
    %p34 = por %p32, %p33
    %p35 = scmp.ne.s32.totalorder %s24, %s25
    %p36 = scmp.eq.s32.totalorder %s16, 0
    %p37 = por %p35, %p36
    %p38 = scmp.ne.s32.totalorder %s24, %s25
    %p39 = scmp.eq.s32.totalorder %s17, 1
    %p40 = por %p38, %p39
    %p42 = scmp.ne.s32.totalorder %s25, %s41
    %p43 = scmp.eq.s32.totalorder %s17, 0
    %p44 = por %p42, %p43
    %s46 = sadd.s32 %s45, 1
    %p49 = scmp.eq.s32.totalorder %s11, 1
    %p50 = scmp.ne.s32.totalorder %s45, %s47
    %p51 = scmp.eq.s32.totalorder %s11, 0
    %p52 = por %p50, %p51
    %p53 = scmp.ne.s32.totalorder %s45, %s47
    %p54 = scmp.eq.s32.totalorder %s16, 1
    %p55 = por %p53, %p54
    %p56 = scmp.ne.s32.totalorder %s47, %s48
    %p57 = scmp.eq.s32.totalorder %s16, 0
    %p58 = por %p56, %p57
    %p59 = scmp.ne.s32.totalorder %s47, %s48
    %p60 = scmp.eq.s32.totalorder %s17, 1
    %p61 = por %p59, %p60
    %p63 = scmp.ne.s32.totalorder %s48, %s62
    %p64 = scmp.eq.s32.totalorder %s17, 0
    %p65 = por %p63, %p64
    %s67 = sadd.s32 %s66, 1
    %p70 = scmp.eq.s32.totalorder %s11, 1
    %p71 = scmp.ne.s32.totalorder %s66, %s68
    %p72 = scmp.eq.s32.totalorder %s11, 0
    %p73 = por %p71, %p72
    %p74 = scmp.ne.s32.totalorder %s66, %s68
    %p75 = scmp.eq.s32.totalorder %s16, 1
    %p76 = por %p74, %p75
    %p77 = scmp.ne.s32.totalorder %s68, %s69
    %p78 = scmp.eq.s32.totalorder %s16, 0
    %p79 = por %p77, %p78
    %p80 = scmp.ne.s32.totalorder %s68, %s69
    %p81 = scmp.eq.s32.totalorder %s17, 1
    %p82 = por %p80, %p81
    %p84 = scmp.ne.s32.totalorder %s69, %s83
    %p85 = scmp.eq.s32.totalorder %s17, 0
    %p86 = por %p84, %p85
    %s88 = sadd.s32 %s87, 1
    %p91 = scmp.eq.s32.totalorder %s11, 1
    %p92 = scmp.ne.s32.totalorder %s87, %s89
    %p93 = scmp.eq.s32.totalorder %s11, 0
    %p94 = por %p92, %p93
    %p95 = scmp.ne.s32.totalorder %s87, %s89
    %p96 = scmp.eq.s32.totalorder %s16, 1
    %p97 = por %p95, %p96
    %p98 = scmp.ne.s32.totalorder %s89, %s90
    %p99 = scmp.eq.s32.totalorder %s16, 0
    %p100 = por %p98, %p99
    %p101 = scmp.ne.s32.totalorder %s89, %s90
    %p102 = scmp.eq.s32.totalorder %s17, 1
    %p103 = por %p101, %p102
    %p105 = scmp.ne.s32.totalorder %s90, %s104
    %p106 = scmp.eq.s32.totalorder %s17, 0
    %p107 = por %p105, %p106
    %s109 = sadd.s32 %s108, 1
    %p112 = scmp.eq.s32.totalorder %s11, 1
    %p113 = scmp.ne.s32.totalorder %s108, %s110
    %p114 = scmp.eq.s32.totalorder %s11, 0
    %p115 = por %p113, %p114
    %p116 = scmp.ne.s32.totalorder %s108, %s110
    %p117 = scmp.eq.s32.totalorder %s16, 1
    %p118 = por %p116, %p117
    %p119 = scmp.ne.s32.totalorder %s110, %s111
    %p120 = scmp.eq.s32.totalorder %s16, 0
    %p121 = por %p119, %p120
    %p122 = scmp.ne.s32.totalorder %s110, %s111
    %p123 = scmp.eq.s32.totalorder %s17, 1
    %p124 = por %p122, %p123
    %p126 = scmp.ne.s32.totalorder %s111, %s125
    %p127 = scmp.eq.s32.totalorder %s17, 0
    %p128 = por %p126, %p127
    %s129 = ssub.s32 %s11, %s18
    %p130 = scmp.eq.s32.totalorder %s129, 0
    %s132 = sadd.s32 %s131, 1
    %s133 = scalar_select %p130, %s131, %s132
    %p136 = pneg %p130
    %p137 = scmp.eq.s32.totalorder %s11, 1
    %p138 = por %p136, %p137
    %p139 = scmp.ne.s32.totalorder %s131, %s134
    %p140 = scmp.eq.s32.totalorder %s11, 0
    %p141 = por %p139, %p140
    %p142 = scmp.ne.s32.totalorder %s131, %s134
    %p143 = scmp.eq.s32.totalorder %s16, 1
    %p144 = por %p142, %p143
    %p145 = scmp.ne.s32.totalorder %s134, %s135
    %p146 = scmp.eq.s32.totalorder %s16, 0
    %p147 = por %p145, %p146
    %p148 = scmp.ne.s32.totalorder %s134, %s135
    %p149 = scmp.eq.s32.totalorder %s17, 1
    %p150 = por %p148, %p149
    %p152 = scmp.ne.s32.totalorder %s135, %s151
    %p153 = scmp.eq.s32.totalorder %s17, 0
    %p154 = por %p152, %p153
    %p155 = scmp.le.s32.totalorder 1, %s11
    %p156 = scmp.lt.s32.totalorder %s11, 3
    %p157 = pnand %p155, %p156
    %p158 = pneg %p157
    // Predicated region
    $region9: #{downsample_cnn_forward.1} parent=5 // pred_check
      _
    $region10: #{downsample_cnn_forward.1} parent=5 // pred_check_branch
      %160 = sbr.rel (%p157) target = $region12
    $region11: #{downsample_cnn_forward.1} parent=5 // pred_region
      %s161 = ssub.s32 %s11, 1
      // Predicated region
      $region13: #{downsample_cnn_forward.1} parent=11 // pred_check
        %p162 = pneg %p58
      $region14: #{downsample_cnn_forward.1} parent=11 // pred_check_branch
        %164 = sbr.rel (%p162) target = $region16
      $region15: #{downsample_cnn_forward.1} parent=11 // pred_region
        _
      $region16: #{downsample_cnn_forward.1} parent=11 // pred_fallthru
        _
      // Predicated region
      $region17: #{downsample_cnn_forward.1} parent=11 // pred_check
        %p165 = pneg %p79
      $region18: #{downsample_cnn_forward.1} parent=11 // pred_check_branch
        %167 = sbr.rel (%p165) target = $region20
      $region19: #{downsample_cnn_forward.1} parent=11 // pred_region
        _
      $region20: #{downsample_cnn_forward.1} parent=11 // pred_fallthru
        _
      // Predicated region
      $region21: #{downsample_cnn_forward.1} parent=11 // pred_check
        %p168 = pneg %p100
      $region22: #{downsample_cnn_forward.1} parent=11 // pred_check_branch
        %170 = sbr.rel (%p168) target = $region24
      $region23: #{downsample_cnn_forward.1} parent=11 // pred_region
        _
      $region24: #{downsample_cnn_forward.1} parent=11 // pred_fallthru
        _
      // Predicated region
      $region25: #{downsample_cnn_forward.1} parent=11 // pred_check
        %p171 = pneg %p121
      $region26: #{downsample_cnn_forward.1} parent=11 // pred_check_branch
        %173 = sbr.rel (%p171) target = $region28
      $region27: #{downsample_cnn_forward.1} parent=11 // pred_region
        _
      $region28: #{downsample_cnn_forward.1} parent=11 // pred_fallthru
        _
    $region12: #{downsample_cnn_forward.1} parent=5 // pred_fallthru
      _
    %p174 = scmp.lt.s32.totalorder %s11, 2
    // Predicated region
    $region29: #{downsample_cnn_forward.1} parent=5 // pred_check
      %p175 = pneg %p174
    $region30: #{downsample_cnn_forward.1} parent=5 // pred_check_branch
      %177 = sbr.rel (%p175) target = $region32
    $region31: #{downsample_cnn_forward.1} parent=5 // pred_region
      // Predicated region
      $region33: #{downsample_cnn_forward.1} parent=31 // pred_check
        %p178 = pneg %p31
      $region34: #{downsample_cnn_forward.1} parent=31 // pred_check_branch
        %180 = sbr.rel (%p178) target = $region36
      $region35: #{downsample_cnn_forward.1} parent=31 // pred_region
        %p181 = scmp.lt.s32.totalorder %s11, 1
        %s182 = scalar_select %p181, %s11, 1
        %s183 = smul.addr %s182, 24
        %s184 = smul.addr %s183, 4
        %s185 = scalar_lea.vmem %s0, %s184
      $region36: #{downsample_cnn_forward.1} parent=31 // pred_fallthru
        _
    $region32: #{downsample_cnn_forward.1} parent=5 // pred_fallthru
      _
    %p186 = scmp.le.s32.totalorder 1, %s11
    %p187 = scmp.lt.s32.totalorder %s11, 3
    %p188 = pnand %p186, %p187
    %p189 = pneg %p188
    // Predicated region
    $region37: #{downsample_cnn_forward.1} parent=5 // pred_check
      _
    $region38: #{downsample_cnn_forward.1} parent=5 // pred_check_branch
      %191 = sbr.rel (%p188) target = $region40
    $region39: #{downsample_cnn_forward.1} parent=5 // pred_region
      %s192 = ssub.s32 %s11, 1
      %p193 = scmp.lt.s32.totalorder %s16, 1
      %s194 = scalar_select %p193, %s16, 1
      %s195 = smul.addr %s194, 24
      %s196 = smul.addr %s195, 4
      %s197 = scalar_lea.vmem %s0, %s196
      %p198 = pneg %p37
      %p199 = pneg %p34
      %p200 = pneg %p58
      %p201 = pneg %p55
      %p202 = pneg %p79
      %p203 = pneg %p76
      %p204 = pneg %p100
      %p205 = pneg %p97
      %p206 = pneg %p121
      %p207 = pneg %p118
      %p208 = pneg %p147
      %p209 = pneg %p144
      %p210 = scmp.lt.s32.totalorder %s16, 1
      %s211 = scalar_select %p210, %s16, 1
      %s212 = smul.addr %s211, 8
      %s213 = scalar_lea.vmem %s5, %s212
      %p214 = scmp.lt.s32.totalorder %s16, 1
      %s215 = scalar_select %p214, %s16, 1
      %s216 = smul.addr %s215, 24
      %s217 = smul.addr %s216, 4
      %s218 = scalar_lea.vmem %s0, %s217
      %p219 = scmp.lt.s32.totalorder %s16, 1
      %s220 = scalar_select %p219, %s16, 1
      %s221 = smul.addr %s220, 8
      %s222 = scalar_lea.vmem %s5, %s221
      %v224 = vld [vmem:[%s1] sm:$0xf]
      %v225 = vld [vmem:[%s218] sm:$0xff]
      %v226 = vld [vmem:[%s218 + $0x8] sm:$0xf]
      %v227 = vld [vmem:[%s218 + $0xc] sm:$0xff]
      %v228 = vld [vmem:[%s218 + $0x14] sm:$0xf]
      %v229 = vld [vmem:[%s218 + $0x18] sm:$0xff]
      %v230 = vld [vmem:[%s218 + $0x20] sm:$0xf]
      %v231 = vld [vmem:[%s218 + $0x24] sm:$0xff]
      %v232 = vld [vmem:[%s218 + $0x2c] sm:$0xf]
      %v233 = vld [vmem:[%s218 + $0x30] sm:$0xff]
      %v234 = vld [vmem:[%s218 + $0x38] sm:$0xf]
      %v235 = vld [vmem:[%s218 + $0x3c] sm:$0xff]
      %v236 = vld [vmem:[%s218 + $0x44] sm:$0xf]
      %v237 = vld [vmem:[%s218 + $0x48] sm:$0xff]
      %v238 = vld [vmem:[%s218 + $0x50] sm:$0xf]
      %v239 = vld [vmem:[%s218 + $0x54] sm:$0xff]
      %v240 = vld [vmem:[%s218 + $0x5c] sm:$0xf]
      %v241 = vld [vmem:[%s2] sm:$0xff]
      %243 = vset.pattern.permute.xlu0 0
      %244 = vperm.xlu0 %243, %v241
      %v245 = vpop.permute.xlu0 %244
      %v263 = vunpack.c.l.b16 %v225
      %v264 = vunpack.c.h.b16 %v225
      %v265 = vunpack.c.l.b16 %v226
      %v266 = vunpack.c.l.b16 %v227
      %v267 = vunpack.c.h.b16 %v227
      %v268 = vunpack.c.l.b16 %v228
      %v269 = vunpack.c.l.b16 %v229
      %v270 = vunpack.c.h.b16 %v229
      %v271 = vunpack.c.l.b16 %v230
      %v272 = vunpack.c.l.b16 %v231
      %v273 = vunpack.c.h.b16 %v231
      %v274 = vunpack.c.l.b16 %v232
      %v275 = vunpack.c.l.b16 %v233
      %v276 = vunpack.c.h.b16 %v233
      %v277 = vunpack.c.l.b16 %v234
      %v278 = vunpack.c.l.b16 %v235
      %v279 = vunpack.c.h.b16 %v235
      %v280 = vunpack.c.l.b16 %v236
      %v281 = vunpack.c.l.b16 %v237
      %v282 = vunpack.c.h.b16 %v237
      %v283 = vunpack.c.l.b16 %v238
      %v284 = vunpack.c.l.b16 %v239
      %v285 = vunpack.c.h.b16 %v239
      %v286 = vunpack.c.l.b16 %v240
      %v287 = vpack.c.b16 %v266, %v263
      %v288 = vpack.c.b16 %v267, %v264
      %v289 = vpack.c.b16 %v268, %v265
      %v290 = vpack.c.b16 %v272, %v269
      %v291 = vpack.c.b16 %v273, %v270
      %v292 = vpack.c.b16 %v274, %v271
      %v293 = vpack.c.b16 %v278, %v275
      %v294 = vpack.c.b16 %v279, %v276
      %v295 = vpack.c.b16 %v280, %v277
      %v296 = vpack.c.b16 %v284, %v281
      %v297 = vpack.c.b16 %v285, %v282
      %v298 = vpack.c.b16 %v286, %v283
      %vm311 = vcmask 523264
      %v313 = vsel %vm311, %v224, 0
      %315 = vmatprep.subr.bf16.mxu0 %v288
      %316 = vmatpush1.bf16.msra.mxu0 %v287
      %317 = vmatprep.subr.bf16.mxu0 %v291
      %318 = vmatpush1.bf16.msra.mxu0 %v290
      %319 = vmatprep.subr.bf16.mxu0 %v294
      %320 = vmatpush1.bf16.msra.mxu0 %v293
      %321 = vmatprep.subr.bf16.mxu0 %v297
      %322 = vmatpush1.bf16.msra.mxu0 %v296
      %323 = vmatprep.subr.bf16.mxu0 0
      %324 = vmatpush1.bf16.msra.mxu0 0
      %325 = vmatprep.subr.bf16.mxu0 0
      %326 = vmatpush1.bf16.msra.mxu0 0
      %327 = vmatprep.subr.bf16.mxu0 0
      %328 = vmatpush1.bf16.msra.mxu0 0
      %329 = vmatprep.subr.bf16.mxu0 0
      %330 = vmatpush1.bf16.msra.mxu0 0
      %331 = vmatprep.subr.bf16.mxu0 0
      %332 = vmatpush1.bf16.msra.mxu0 0
      %333 = vmatprep.subr.bf16.mxu0 0
      %334 = vmatpush1.bf16.msra.mxu0 0
      %335 = vmatprep.subr.bf16.mxu0 0
      %336 = vmatpush1.bf16.msra.mxu0 0
      %337 = vmatprep.subr.bf16.mxu0 0
      %338 = vmatpush1.bf16.msra.mxu0 0
      %339 = vmatprep.subr.bf16.mxu0 0
      %340 = vmatpush1.bf16.msra.mxu0 0
      %341 = vmatprep.subr.bf16.mxu0 0
      %342 = vmatpush1.bf16.msra.mxu0 0
      %343 = vmatprep.subr.bf16.mxu0 0
      %344 = vmatpush1.bf16.msra.mxu0 0
      %345 = vmatprep.subr.bf16.mxu0 0
      %346 = vmatpush1.bf16.msra.mxu0 0
      %347 = vmatprep.mubr.bf16.mxu0 0
      %348 = vmatmul.mubr.bf16.gmra.mrb[0].mxu0 %v313
      %v349 = vpop.f32.mrb[0].mxu0
      %v350 = vadd.f32 %v245, %v349
      %v351 = vpop.f32.mrb[0].mxu0
      %v352 = vadd.f32 %v245, %v351
      %v353 = vpop.f32.mrb[0].mxu0
      %v354 = vpop.f32.mrb[0].mxu0
      %355 = vdwg.mxu0
      %356 = vmatprep.subr.bf16.mxu0 0
      %357 = vmatpush1.bf16.msra.mxu0 %v289
      %358 = vmatprep.subr.bf16.mxu0 0
      %359 = vmatpush1.bf16.msra.mxu0 %v292
      %360 = vmatprep.subr.bf16.mxu0 0
      %361 = vmatpush1.bf16.msra.mxu0 %v295
      %362 = vmatprep.subr.bf16.mxu0 0
      %363 = vmatpush1.bf16.msra.mxu0 %v298
      %364 = vmatprep.subr.bf16.mxu0 0
      %365 = vmatpush1.bf16.msra.mxu0 0
      %366 = vmatprep.subr.bf16.mxu0 0
      %367 = vmatpush1.bf16.msra.mxu0 0
      %368 = vmatprep.subr.bf16.mxu0 0
      %369 = vmatpush1.bf16.msra.mxu0 0
      %370 = vmatprep.subr.bf16.mxu0 0
      %371 = vmatpush1.bf16.msra.mxu0 0
      %372 = vmatprep.subr.bf16.mxu0 0
      %373 = vmatpush1.bf16.msra.mxu0 0
      %374 = vmatprep.subr.bf16.mxu0 0
      %375 = vmatpush1.bf16.msra.mxu0 0
      %376 = vmatprep.subr.bf16.mxu0 0
      %377 = vmatpush1.bf16.msra.mxu0 0
      %378 = vmatprep.subr.bf16.mxu0 0
      %379 = vmatpush1.bf16.msra.mxu0 0
      %380 = vmatprep.subr.bf16.mxu0 0
      %381 = vmatpush1.bf16.msra.mxu0 0
      %382 = vmatprep.subr.bf16.mxu0 0
      %383 = vmatpush1.bf16.msra.mxu0 0
      %384 = vmatprep.subr.bf16.mxu0 0
      %385 = vmatpush1.bf16.msra.mxu0 0
      %386 = vmatprep.subr.bf16.mxu0 0
      %387 = vmatpush1.bf16.msra.mxu0 0
      %388 = vmatprep.mubr.bf16.mxu0 0
      %389 = vmatmul.mubr.bf16.gmra.mrb[0].mxu0 %v313
      %v390 = vpop.f32.mrb[0].mxu0
      %v391 = vadd.f32 %v245, %v390
      %v392 = vpop.f32.mrb[0].mxu0
      %v393 = vpop.f32.mrb[0].mxu0
      %v394 = vpop.f32.mrb[0].mxu0
      %395 = vdwg.mxu0
      %v396 = vmax.f32 %v350, 0.0
      %v397 = vmax.f32 %v352, 0.0
      %v398 = vmax.f32 %v391, 0.0
      %402 = vrot.lane.b32.xlu0 %v396, 111
      %v403 = vpop.permute.xlu0 %402
      %404 = vrot.lane.b32.xlu0 %v397, 111
      %v405 = vpop.permute.xlu0 %404
      %406 = vrot.lane.b32.xlu0 %v398, 111
      %v407 = vpop.permute.xlu0 %406
      %vm408 = vcmask 908288
      %v409 = vsel %vm408, %v403, %v405
      %v410 = vsel %vm408, %v405, %v407
      %v413 = vmax.f32 %v396, %v409
      %v414 = vmax.f32 %v397, %v410
      %415 = vrot.lane.b32.xlu0 %v396, 94
      %v416 = vpop.permute.xlu0 %415
      %417 = vrot.lane.b32.xlu0 %v397, 94
      %v418 = vpop.permute.xlu0 %417
      %419 = vrot.lane.b32.xlu0 %v398, 94
      %v420 = vpop.permute.xlu0 %419
      %vm421 = vcmask 769024
      %v422 = vsel %vm421, %v416, %v418
      %v423 = vsel %vm421, %v418, %v420
      %v426 = vmax.f32 %v413, %v422
      %v427 = vmax.f32 %v414, %v423
      %430 = vrot.lane.b32.xlu0 %v426, 127
      %v431 = vpop.permute.xlu0 %430
      %432 = vrot.lane.b32.xlu0 %v427, 127
      %v433 = vpop.permute.xlu0 %432
      %vm434 = vcmask 1039360
      %v435 = vsel %vm434, %v431, %v433
      %v438 = vmax.f32 %v426, %v435
      %v439 = vmax.f32 %v427, %v433
      %440 = vrot.lane.b32.xlu0 %v426, 126
      %v441 = vpop.permute.xlu0 %440
      %442 = vrot.lane.b32.xlu0 %v427, 126
      %v443 = vpop.permute.xlu0 %442
      %vm444 = vcmask 1031168
      %v445 = vsel %vm444, %v441, %v443
      %v448 = vmax.f32 %v438, %v445
      %v449 = vmax.f32 %v439, %v443
      %v451 = vcombine.high %v448, %v448
      %v453 = vunpack.c.l.s4 1966171168
      %v454 = vunpack.c.0.s8 %v453
      %v455 = vlaneseq
      %v456 = vshrl.u32 %v455, 7
      %v457 = vsub.s32 %v454, %v456
      %v458 = vrot.slane %v448, %v457
      %v460 = vunpack.c.l.s4 1966171168
      %v461 = vunpack.c.0.s8 %v460
      %v462 = vlaneseq
      %v463 = vshrl.u32 %v462, 7
      %v464 = vsub.s32 %v461, %v463
      %v465 = vrot.slane %v451, %v464
      %v466 = vcombine.high %v458, %v458
      %v467 = vcombine.high %v465, %v465
      %v469 = vunpack.c.l.s4 1966171168
      %v470 = vunpack.c.0.s8 %v469
      %v471 = vlaneseq
      %v472 = vshrl.u32 %v471, 7
      %v473 = vsub.s32 %v470, %v472
      %v474 = vrot.slane %v458, %v473
      %v476 = vunpack.c.l.s4 1966171168
      %v477 = vunpack.c.0.s8 %v476
      %v478 = vlaneseq
      %v479 = vshrl.u32 %v478, 7
      %v480 = vsub.s32 %v477, %v479
      %v481 = vrot.slane %v465, %v480
      %v483 = vunpack.c.l.s4 1966171168
      %v484 = vunpack.c.0.s8 %v483
      %v485 = vlaneseq
      %v486 = vshrl.u32 %v485, 7
      %v487 = vsub.s32 %v484, %v486
      %v488 = vrot.slane %v466, %v487
      %v490 = vunpack.c.l.s4 1966171168
      %v491 = vunpack.c.0.s8 %v490
      %v492 = vlaneseq
      %v493 = vshrl.u32 %v492, 7
      %v494 = vsub.s32 %v491, %v493
      %v495 = vrot.slane %v467, %v494
      %v496 = vcombine.high %v474, %v474
      %v497 = vcombine.high %v481, %v481
      %v498 = vcombine.high %v488, %v488
      %v499 = vcombine.high %v495, %v495
      %v509 = vcombine.high %v449, %v449
      %v511 = vunpack.c.l.s4 1966171168
      %v512 = vunpack.c.0.s8 %v511
      %v513 = vlaneseq
      %v514 = vshrl.u32 %v513, 7
      %v515 = vsub.s32 %v512, %v514
      %v516 = vrot.slane %v449, %v515
      %v518 = vunpack.c.l.s4 1966171168
      %v519 = vunpack.c.0.s8 %v518
      %v520 = vlaneseq
      %v521 = vshrl.u32 %v520, 7
      %v522 = vsub.s32 %v519, %v521
      %v523 = vrot.slane %v509, %v522
      %v524 = vcombine.high %v516, %v516
      %v525 = vcombine.high %v523, %v523
      %v527 = vunpack.c.l.s4 1966171168
      %v528 = vunpack.c.0.s8 %v527
      %v529 = vlaneseq
      %v530 = vshrl.u32 %v529, 7
      %v531 = vsub.s32 %v528, %v530
      %v532 = vrot.slane %v516, %v531
      %v534 = vunpack.c.l.s4 1966171168
      %v535 = vunpack.c.0.s8 %v534
      %v536 = vlaneseq
      %v537 = vshrl.u32 %v536, 7
      %v538 = vsub.s32 %v535, %v537
      %v539 = vrot.slane %v523, %v538
      %v541 = vunpack.c.l.s4 1966171168
      %v542 = vunpack.c.0.s8 %v541
      %v543 = vlaneseq
      %v544 = vshrl.u32 %v543, 7
      %v545 = vsub.s32 %v542, %v544
      %v546 = vrot.slane %v524, %v545
      %v548 = vunpack.c.l.s4 1966171168
      %v549 = vunpack.c.0.s8 %v548
      %v550 = vlaneseq
      %v551 = vshrl.u32 %v550, 7
      %v552 = vsub.s32 %v549, %v551
      %v553 = vrot.slane %v525, %v552
      %v554 = vcombine.high %v532, %v532
      %v555 = vcombine.high %v539, %v539
      %v556 = vcombine.high %v546, %v546
      %v557 = vcombine.high %v553, %v553
      %v558 = vlaneseq
      %v559 = vshrl.u32 %v558, 7
      %v560 = vsub.s32 0, %v559
      %v561 = vrot.slane %v474, %v560
      %v562 = vlaneseq
      %v563 = vshrl.u32 %v562, 7
      %v564 = vsub.s32 0, %v563
      %v565 = vrot.slane %v488, %v564
      %v566 = vlaneseq
      %v567 = vshrl.u32 %v566, 7
      %v568 = vsub.s32 0, %v567
      %v569 = vrot.slane %v496, %v568
      %v570 = vlaneseq
      %v571 = vshrl.u32 %v570, 7
      %v572 = vsub.s32 0, %v571
      %v573 = vrot.slane %v498, %v572
      %v574 = vlaneseq
      %v575 = vshrl.u32 %v574, 7
      %v576 = vsub.s32 0, %v575
      %v577 = vrot.slane %v481, %v576
      %v578 = vlaneseq
      %v579 = vshrl.u32 %v578, 7
      %v580 = vsub.s32 0, %v579
      %v581 = vrot.slane %v495, %v580
      %v582 = vlaneseq
      %v583 = vshrl.u32 %v582, 7
      %v584 = vsub.s32 0, %v583
      %v585 = vrot.slane %v497, %v584
      %v586 = vlaneseq
      %v587 = vshrl.u32 %v586, 7
      %v588 = vsub.s32 0, %v587
      %v589 = vrot.slane %v499, %v588
      %590 = vrot.lane.b32.xlu0 %v561, 94
      %v591 = vpop.permute.xlu0 %590
      %592 = vrot.lane.b32.xlu0 %v565, 94
      %v593 = vpop.permute.xlu0 %592
      %594 = vrot.lane.b32.xlu0 %v569, 94
      %v595 = vpop.permute.xlu0 %594
      %596 = vrot.lane.b32.xlu0 %v573, 94
      %v597 = vpop.permute.xlu0 %596
      %598 = vrot.lane.b32.xlu0 %v577, 94
      %v599 = vpop.permute.xlu0 %598
      %600 = vrot.lane.b32.xlu0 %v581, 94
      %v601 = vpop.permute.xlu0 %600
      %602 = vrot.lane.b32.xlu0 %v585, 94
      %v603 = vpop.permute.xlu0 %602
      %604 = vrot.lane.b32.xlu0 %v589, 94
      %v605 = vpop.permute.xlu0 %604
      %614 = vrot.lane.b32.xlu0 %v561, 60
      %v615 = vpop.permute.xlu0 %614
      %616 = vrot.lane.b32.xlu0 %v565, 60
      %v617 = vpop.permute.xlu0 %616
      %618 = vrot.lane.b32.xlu0 %v569, 60
      %v619 = vpop.permute.xlu0 %618
      %620 = vrot.lane.b32.xlu0 %v573, 60
      %v621 = vpop.permute.xlu0 %620
      %622 = vrot.lane.b32.xlu0 %v577, 60
      %v623 = vpop.permute.xlu0 %622
      %624 = vrot.lane.b32.xlu0 %v581, 60
      %v625 = vpop.permute.xlu0 %624
      %626 = vrot.lane.b32.xlu0 %v585, 60
      %v627 = vpop.permute.xlu0 %626
      %628 = vrot.lane.b32.xlu0 %v589, 60
      %v629 = vpop.permute.xlu0 %628
      %638 = vrot.lane.b32.xlu0 %v561, 26
      %v639 = vpop.permute.xlu0 %638
      %640 = vrot.lane.b32.xlu0 %v565, 26
      %v641 = vpop.permute.xlu0 %640
      %642 = vrot.lane.b32.xlu0 %v569, 26
      %v643 = vpop.permute.xlu0 %642
      %644 = vrot.lane.b32.xlu0 %v573, 26
      %v645 = vpop.permute.xlu0 %644
      %646 = vrot.lane.b32.xlu0 %v577, 26
      %v647 = vpop.permute.xlu0 %646
      %648 = vrot.lane.b32.xlu0 %v581, 26
      %v649 = vpop.permute.xlu0 %648
      %650 = vrot.lane.b32.xlu0 %v585, 26
      %v651 = vpop.permute.xlu0 %650
      %652 = vrot.lane.b32.xlu0 %v589, 26
      %v653 = vpop.permute.xlu0 %652
      %v662 = vlaneseq
      %v663 = vshrl.u32 %v662, 7
      %v664 = vsub.s32 0, %v663
      %v665 = vrot.slane %v532, %v664
      %v666 = vlaneseq
      %v667 = vshrl.u32 %v666, 7
      %v668 = vsub.s32 0, %v667
      %v669 = vrot.slane %v546, %v668
      %v670 = vlaneseq
      %v671 = vshrl.u32 %v670, 7
      %v672 = vsub.s32 0, %v671
      %v673 = vrot.slane %v554, %v672
      %v674 = vlaneseq
      %v675 = vshrl.u32 %v674, 7
      %v676 = vsub.s32 0, %v675
      %v677 = vrot.slane %v556, %v676
      %v678 = vlaneseq
      %v679 = vshrl.u32 %v678, 7
      %v680 = vsub.s32 0, %v679
      %v681 = vrot.slane %v539, %v680
      %v682 = vlaneseq
      %v683 = vshrl.u32 %v682, 7
      %v684 = vsub.s32 0, %v683
      %v685 = vrot.slane %v553, %v684
      %v686 = vlaneseq
      %v687 = vshrl.u32 %v686, 7
      %v688 = vsub.s32 0, %v687
      %v689 = vrot.slane %v555, %v688
      %v690 = vlaneseq
      %v691 = vshrl.u32 %v690, 7
      %v692 = vsub.s32 0, %v691
      %v693 = vrot.slane %v557, %v692
      %694 = vrot.lane.b32.xlu0 %v665, 120
      %v695 = vpop.permute.xlu0 %694
      %696 = vrot.lane.b32.xlu0 %v669, 120
      %v697 = vpop.permute.xlu0 %696
      %698 = vrot.lane.b32.xlu0 %v673, 120
      %v699 = vpop.permute.xlu0 %698
      %700 = vrot.lane.b32.xlu0 %v677, 120
      %v701 = vpop.permute.xlu0 %700
      %702 = vrot.lane.b32.xlu0 %v681, 120
      %v703 = vpop.permute.xlu0 %702
      %704 = vrot.lane.b32.xlu0 %v685, 120
      %v705 = vpop.permute.xlu0 %704
      %706 = vrot.lane.b32.xlu0 %v689, 120
      %v707 = vpop.permute.xlu0 %706
      %708 = vrot.lane.b32.xlu0 %v693, 120
      %v709 = vpop.permute.xlu0 %708
      %718 = vrot.lane.b32.xlu0 %v665, 86
      %v719 = vpop.permute.xlu0 %718
      %720 = vrot.lane.b32.xlu0 %v669, 86
      %v721 = vpop.permute.xlu0 %720
      %722 = vrot.lane.b32.xlu0 %v673, 86
      %v723 = vpop.permute.xlu0 %722
      %724 = vrot.lane.b32.xlu0 %v677, 86
      %v725 = vpop.permute.xlu0 %724
      %726 = vrot.lane.b32.xlu0 %v681, 86
      %v727 = vpop.permute.xlu0 %726
      %728 = vrot.lane.b32.xlu0 %v685, 86
      %v729 = vpop.permute.xlu0 %728
      %730 = vrot.lane.b32.xlu0 %v689, 86
      %v731 = vpop.permute.xlu0 %730
      %732 = vrot.lane.b32.xlu0 %v693, 86
      %v733 = vpop.permute.xlu0 %732
      %742 = vrot.lane.b32.xlu0 %v665, 52
      %v743 = vpop.permute.xlu0 %742
      %744 = vrot.lane.b32.xlu0 %v669, 52
      %v745 = vpop.permute.xlu0 %744
      %746 = vrot.lane.b32.xlu0 %v673, 52
      %v747 = vpop.permute.xlu0 %746
      %748 = vrot.lane.b32.xlu0 %v677, 52
      %v749 = vpop.permute.xlu0 %748
      %750 = vrot.lane.b32.xlu0 %v681, 52
      %v751 = vpop.permute.xlu0 %750
      %752 = vrot.lane.b32.xlu0 %v685, 52
      %v753 = vpop.permute.xlu0 %752
      %754 = vrot.lane.b32.xlu0 %v689, 52
      %v755 = vpop.permute.xlu0 %754
      %756 = vrot.lane.b32.xlu0 %v693, 52
      %v757 = vpop.permute.xlu0 %756
      %766 = vrot.lane.b32.xlu0 %v665, 18
      %v767 = vpop.permute.xlu0 %766
      %768 = vrot.lane.b32.xlu0 %v669, 18
      %v769 = vpop.permute.xlu0 %768
      %770 = vrot.lane.b32.xlu0 %v673, 18
      %v771 = vpop.permute.xlu0 %770
      %772 = vrot.lane.b32.xlu0 %v677, 18
      %v773 = vpop.permute.xlu0 %772
      %774 = vrot.lane.b32.xlu0 %v681, 18
      %v775 = vpop.permute.xlu0 %774
      %776 = vrot.lane.b32.xlu0 %v685, 18
      %v777 = vpop.permute.xlu0 %776
      %778 = vrot.lane.b32.xlu0 %v689, 18
      %v779 = vpop.permute.xlu0 %778
      %780 = vrot.lane.b32.xlu0 %v693, 18
      %v781 = vpop.permute.xlu0 %780
      %vm790 = vcmask 1040384
      %v791 = vsel %vm790, %v474, %v591
      %v792 = vsel %vm790, %v488, %v593
      %v793 = vsel %vm790, %v496, %v595
      %v794 = vsel %vm790, %v498, %v597
      %v795 = vsel %vm790, %v481, %v599
      %v796 = vsel %vm790, %v495, %v601
      %v797 = vsel %vm790, %v497, %v603
      %v798 = vsel %vm790, %v499, %v605
      %vm799 = vcmask 1041408
      %v800 = vsel %vm799, %v791, %v615
      %v801 = vsel %vm799, %v792, %v617
      %v802 = vsel %vm799, %v793, %v619
      %v803 = vsel %vm799, %v794, %v621
      %v804 = vsel %vm799, %v795, %v623
      %v805 = vsel %vm799, %v796, %v625
      %v806 = vsel %vm799, %v797, %v627
      %v807 = vsel %vm799, %v798, %v629
      %vm808 = vcmask 1042432
      %v809 = vsel %vm808, %v800, %v639
      %v810 = vsel %vm808, %v801, %v641
      %v811 = vsel %vm808, %v802, %v643
      %v812 = vsel %vm808, %v803, %v645
      %v813 = vsel %vm808, %v804, %v647
      %v814 = vsel %vm808, %v805, %v649
      %v815 = vsel %vm808, %v806, %v651
      %v816 = vsel %vm808, %v807, %v653
      %vm817 = vcmask 1043456
      %v818 = vsel %vm817, %v809, %v695
      %v819 = vsel %vm817, %v810, %v697
      %v820 = vsel %vm817, %v811, %v699
      %v821 = vsel %vm817, %v812, %v701
      %v822 = vsel %vm817, %v813, %v703
      %v823 = vsel %vm817, %v814, %v705
      %v824 = vsel %vm817, %v815, %v707
      %v825 = vsel %vm817, %v816, %v709
      %vm826 = vcmask 1044480
      %v827 = vsel %vm826, %v818, %v719
      %v828 = vsel %vm826, %v819, %v721
      %v829 = vsel %vm826, %v820, %v723
      %v830 = vsel %vm826, %v821, %v725
      %v831 = vsel %vm826, %v822, %v727
      %v832 = vsel %vm826, %v823, %v729
      %v833 = vsel %vm826, %v824, %v731
      %v834 = vsel %vm826, %v825, %v733
      %vm835 = vcmask 1045504
      %v836 = vsel %vm835, %v827, %v743
      %v837 = vsel %vm835, %v828, %v745
      %v838 = vsel %vm835, %v829, %v747
      %v839 = vsel %vm835, %v830, %v749
      %v840 = vsel %vm835, %v831, %v751
      %v841 = vsel %vm835, %v832, %v753
      %v842 = vsel %vm835, %v833, %v755
      %v843 = vsel %vm835, %v834, %v757
      %vm844 = vcmask 1046528
      %v845 = vsel %vm844, %v836, %v767
      %v846 = vsel %vm844, %v837, %v769
      %v847 = vsel %vm844, %v838, %v771
      %v848 = vsel %vm844, %v839, %v773
      %v849 = vsel %vm844, %v840, %v775
      %v850 = vsel %vm844, %v841, %v777
      %v851 = vsel %vm844, %v842, %v779
      %v852 = vsel %vm844, %v843, %v781
      %861 = vrot.lane.b32.xlu0 %v845, 127
      %v862 = vpop.permute.xlu0 %861
      %863 = vrot.lane.b32.xlu0 %v846, 127
      %v864 = vpop.permute.xlu0 %863
      %865 = vrot.lane.b32.xlu0 %v847, 127
      %v866 = vpop.permute.xlu0 %865
      %867 = vrot.lane.b32.xlu0 %v848, 127
      %v868 = vpop.permute.xlu0 %867
      %869 = vrot.lane.b32.xlu0 %v849, 127
      %v870 = vpop.permute.xlu0 %869
      %871 = vrot.lane.b32.xlu0 %v850, 127
      %v872 = vpop.permute.xlu0 %871
      %873 = vrot.lane.b32.xlu0 %v851, 127
      %v874 = vpop.permute.xlu0 %873
      %875 = vrot.lane.b32.xlu0 %v852, 127
      %v876 = vpop.permute.xlu0 %875
      %885 = vrot.lane.b32.xlu0 %v845, 126
      %v886 = vpop.permute.xlu0 %885
      %887 = vrot.lane.b32.xlu0 %v846, 126
      %v888 = vpop.permute.xlu0 %887
      %889 = vrot.lane.b32.xlu0 %v847, 126
      %v890 = vpop.permute.xlu0 %889
      %891 = vrot.lane.b32.xlu0 %v848, 126
      %v892 = vpop.permute.xlu0 %891
      %893 = vrot.lane.b32.xlu0 %v849, 126
      %v894 = vpop.permute.xlu0 %893
      %895 = vrot.lane.b32.xlu0 %v850, 126
      %v896 = vpop.permute.xlu0 %895
      %897 = vrot.lane.b32.xlu0 %v851, 126
      %v898 = vpop.permute.xlu0 %897
      %899 = vrot.lane.b32.xlu0 %v852, 126
      %v900 = vpop.permute.xlu0 %899
      %909 = vrot.lane.b32.xlu0 %v845, 125
      %v910 = vpop.permute.xlu0 %909
      %911 = vrot.lane.b32.xlu0 %v846, 125
      %v912 = vpop.permute.xlu0 %911
      %913 = vrot.lane.b32.xlu0 %v847, 125
      %v914 = vpop.permute.xlu0 %913
      %915 = vrot.lane.b32.xlu0 %v848, 125
      %v916 = vpop.permute.xlu0 %915
      %917 = vrot.lane.b32.xlu0 %v849, 125
      %v918 = vpop.permute.xlu0 %917
      %919 = vrot.lane.b32.xlu0 %v850, 125
      %v920 = vpop.permute.xlu0 %919
      %921 = vrot.lane.b32.xlu0 %v851, 125
      %v922 = vpop.permute.xlu0 %921
      %923 = vrot.lane.b32.xlu0 %v852, 125
      %v924 = vpop.permute.xlu0 %923
      %933 = vrot.lane.b32.xlu0 %v845, 124
      %v934 = vpop.permute.xlu0 %933
      %935 = vrot.lane.b32.xlu0 %v846, 124
      %v936 = vpop.permute.xlu0 %935
      %937 = vrot.lane.b32.xlu0 %v847, 124
      %v938 = vpop.permute.xlu0 %937
      %939 = vrot.lane.b32.xlu0 %v848, 124
      %v940 = vpop.permute.xlu0 %939
      %941 = vrot.lane.b32.xlu0 %v849, 124
      %v942 = vpop.permute.xlu0 %941
      %943 = vrot.lane.b32.xlu0 %v850, 124
      %v944 = vpop.permute.xlu0 %943
      %945 = vrot.lane.b32.xlu0 %v851, 124
      %v946 = vpop.permute.xlu0 %945
      %947 = vrot.lane.b32.xlu0 %v852, 124
      %v948 = vpop.permute.xlu0 %947
      %957 = vrot.lane.b32.xlu0 %v845, 123
      %v958 = vpop.permute.xlu0 %957
      %959 = vrot.lane.b32.xlu0 %v846, 123
      %v960 = vpop.permute.xlu0 %959
      %961 = vrot.lane.b32.xlu0 %v847, 123
      %v962 = vpop.permute.xlu0 %961
      %963 = vrot.lane.b32.xlu0 %v848, 123
      %v964 = vpop.permute.xlu0 %963
      %965 = vrot.lane.b32.xlu0 %v849, 123
      %v966 = vpop.permute.xlu0 %965
      %967 = vrot.lane.b32.xlu0 %v850, 123
      %v968 = vpop.permute.xlu0 %967
      %969 = vrot.lane.b32.xlu0 %v851, 123
      %v970 = vpop.permute.xlu0 %969
      %971 = vrot.lane.b32.xlu0 %v852, 123
      %v972 = vpop.permute.xlu0 %971
      %981 = vrot.lane.b32.xlu0 %v845, 122
      %v982 = vpop.permute.xlu0 %981
      %983 = vrot.lane.b32.xlu0 %v846, 122
      %v984 = vpop.permute.xlu0 %983
      %985 = vrot.lane.b32.xlu0 %v847, 122
      %v986 = vpop.permute.xlu0 %985
      %987 = vrot.lane.b32.xlu0 %v848, 122
      %v988 = vpop.permute.xlu0 %987
      %989 = vrot.lane.b32.xlu0 %v849, 122
      %v990 = vpop.permute.xlu0 %989
      %991 = vrot.lane.b32.xlu0 %v850, 122
      %v992 = vpop.permute.xlu0 %991
      %993 = vrot.lane.b32.xlu0 %v851, 122
      %v994 = vpop.permute.xlu0 %993
      %995 = vrot.lane.b32.xlu0 %v852, 122
      %v996 = vpop.permute.xlu0 %995
      %1005 = vrot.lane.b32.xlu0 %v845, 121
      %v1006 = vpop.permute.xlu0 %1005
      %1007 = vrot.lane.b32.xlu0 %v846, 121
      %v1008 = vpop.permute.xlu0 %1007
      %1009 = vrot.lane.b32.xlu0 %v847, 121
      %v1010 = vpop.permute.xlu0 %1009
      %1011 = vrot.lane.b32.xlu0 %v848, 121
      %v1012 = vpop.permute.xlu0 %1011
      %1013 = vrot.lane.b32.xlu0 %v849, 121
      %v1014 = vpop.permute.xlu0 %1013
      %1015 = vrot.lane.b32.xlu0 %v850, 121
      %v1016 = vpop.permute.xlu0 %1015
      %1017 = vrot.lane.b32.xlu0 %v851, 121
      %v1018 = vpop.permute.xlu0 %1017
      %1019 = vrot.lane.b32.xlu0 %v852, 121
      %v1020 = vpop.permute.xlu0 %1019
      %vm1029 = vcmask 7168
      %v1030 = vsel %vm1029, %v845, %v862
      %v1031 = vsel %vm1029, %v846, %v864
      %v1032 = vsel %vm1029, %v847, %v866
      %v1033 = vsel %vm1029, %v848, %v868
      %v1034 = vsel %vm1029, %v849, %v870
      %v1035 = vsel %vm1029, %v850, %v872
      %v1036 = vsel %vm1029, %v851, %v874
      %v1037 = vsel %vm1029, %v852, %v876
      %vm1038 = vcmask 15360
      %v1039 = vsel %vm1038, %v1030, %v886
      %v1040 = vsel %vm1038, %v1031, %v888
      %v1041 = vsel %vm1038, %v1032, %v890
      %v1042 = vsel %vm1038, %v1033, %v892
      %v1043 = vsel %vm1038, %v1034, %v894
      %v1044 = vsel %vm1038, %v1035, %v896
      %v1045 = vsel %vm1038, %v1036, %v898
      %v1046 = vsel %vm1038, %v1037, %v900
      %vm1047 = vcmask 23552
      %v1048 = vsel %vm1047, %v1039, %v910
      %v1049 = vsel %vm1047, %v1040, %v912
      %v1050 = vsel %vm1047, %v1041, %v914
      %v1051 = vsel %vm1047, %v1042, %v916
      %v1052 = vsel %vm1047, %v1043, %v918
      %v1053 = vsel %vm1047, %v1044, %v920
      %v1054 = vsel %vm1047, %v1045, %v922
      %v1055 = vsel %vm1047, %v1046, %v924
      %vm1056 = vcmask 31744
      %v1057 = vsel %vm1056, %v1048, %v934
      %v1058 = vsel %vm1056, %v1049, %v936
      %v1059 = vsel %vm1056, %v1050, %v938
      %v1060 = vsel %vm1056, %v1051, %v940
      %v1061 = vsel %vm1056, %v1052, %v942
      %v1062 = vsel %vm1056, %v1053, %v944
      %v1063 = vsel %vm1056, %v1054, %v946
      %v1064 = vsel %vm1056, %v1055, %v948
      %vm1065 = vcmask 39936
      %v1066 = vsel %vm1065, %v1057, %v958
      %v1067 = vsel %vm1065, %v1058, %v960
      %v1068 = vsel %vm1065, %v1059, %v962
      %v1069 = vsel %vm1065, %v1060, %v964
      %v1070 = vsel %vm1065, %v1061, %v966
      %v1071 = vsel %vm1065, %v1062, %v968
      %v1072 = vsel %vm1065, %v1063, %v970
      %v1073 = vsel %vm1065, %v1064, %v972
      %vm1074 = vcmask 48128
      %v1075 = vsel %vm1074, %v1066, %v982
      %v1076 = vsel %vm1074, %v1067, %v984
      %v1077 = vsel %vm1074, %v1068, %v986
      %v1078 = vsel %vm1074, %v1069, %v988
      %v1079 = vsel %vm1074, %v1070, %v990
      %v1080 = vsel %vm1074, %v1071, %v992
      %v1081 = vsel %vm1074, %v1072, %v994
      %v1082 = vsel %vm1074, %v1073, %v996
      %vm1083 = vcmask 56320
      %v1084 = vsel %vm1083, %v1075, %v1006
      %v1085 = vsel %vm1083, %v1076, %v1008
      %v1086 = vsel %vm1083, %v1077, %v1010
      %v1087 = vsel %vm1083, %v1078, %v1012
      %v1088 = vsel %vm1083, %v1079, %v1014
      %v1089 = vsel %vm1083, %v1080, %v1016
      %v1090 = vsel %vm1083, %v1081, %v1018
      %v1091 = vsel %vm1083, %v1082, %v1020
      %1092 = vst [vmem:[#allocation2] sm:$0xff] 0.0
      %vm1093 = vcmask 228352
      %1094 = vst.msk [vmem:[#allocation2 + $0x8] sm:$0xff] %vm1093, 0.0
      %v1103 = vrot.slane %v1085, 7
      %vm1104 = vcmask 1041409
      %v1105 = vsel %vm1104, %v1103, %v1084
      %v1106 = vrot.slane %v1086, 6
      %vm1107 = vcmask 1042434
      %v1108 = vsel %vm1107, %v1106, %v1105
      %v1109 = vrot.slane %v1087, 5
      %vm1110 = vcmask 1043459
      %v1111 = vsel %vm1110, %v1109, %v1108
      %v1112 = vrot.slane %v1088, 4
      %vm1113 = vcmask 1044484
      %v1114 = vsel %vm1113, %v1112, %v1111
      %v1115 = vrot.slane %v1089, 3
      %vm1116 = vcmask 1045509
      %v1117 = vsel %vm1116, %v1115, %v1114
      %v1118 = vrot.slane %v1090, 2
      %vm1119 = vcmask 1046534
      %v1120 = vsel %vm1119, %v1118, %v1117
      %v1121 = vrot.slane %v1091, 1
      %vm1122 = vcmask 1047559
      %v1123 = vsel %vm1122, %v1121, %v1120
      %1124 = vrot.lane.b32.xlu0 %v1123, 26
      %v1125 = vpop.permute.xlu0 %1124
      %vm1127 = vcmask 277712
      %1128 = vst.msk [vmem:[#allocation2] sm:$0xff] %vm1127, %v1125
      %v1129 = vrot.slane %v1084, 1
      %v1130 = vsel %vm1104, %v1085, %v1129
      %v1131 = vrot.slane %v1086, 7
      %v1132 = vsel %vm1107, %v1131, %v1130
      %v1133 = vrot.slane %v1087, 6
      %v1134 = vsel %vm1110, %v1133, %v1132
      %v1135 = vrot.slane %v1088, 5
      %v1136 = vsel %vm1113, %v1135, %v1134
      %v1137 = vrot.slane %v1089, 4
      %v1138 = vsel %vm1116, %v1137, %v1136
      %v1139 = vrot.slane %v1090, 3
      %v1140 = vsel %vm1119, %v1139, %v1138
      %v1141 = vrot.slane %v1091, 2
      %v1142 = vsel %vm1122, %v1141, %v1140
      %1143 = vrot.lane.b32.xlu0 %v1142, 38
      %v1144 = vpop.permute.xlu0 %1143
      %vm1146 = vcmask 376112
      %1147 = vst.msk [vmem:[#allocation2] sm:$0xff] %vm1146, %v1144
      %v1148 = vrot.slane %v1084, 2
      %v1149 = vrot.slane %v1085, 1
      %v1150 = vsel %vm1104, %v1149, %v1148
      %v1151 = vsel %vm1107, %v1086, %v1150
      %v1152 = vrot.slane %v1087, 7
      %v1153 = vsel %vm1110, %v1152, %v1151
      %v1154 = vrot.slane %v1088, 6
      %v1155 = vsel %vm1113, %v1154, %v1153
      %v1156 = vrot.slane %v1089, 5
      %v1157 = vsel %vm1116, %v1156, %v1155
      %v1158 = vrot.slane %v1090, 4
      %v1159 = vsel %vm1119, %v1158, %v1157
      %v1160 = vrot.slane %v1091, 3
      %v1161 = vsel %vm1122, %v1160, %v1159
      %1162 = vrot.lane.b32.xlu0 %v1161, 50
      %v1163 = vpop.permute.xlu0 %1162
      %vm1165 = vcmask 474512
      %1166 = vst.msk [vmem:[#allocation2] sm:$0xff] %vm1165, %v1163
      %v1167 = vrot.slane %v1084, 3
      %v1168 = vrot.slane %v1085, 2
      %v1169 = vsel %vm1104, %v1168, %v1167
      %v1170 = vrot.slane %v1086, 1
      %v1171 = vsel %vm1107, %v1170, %v1169
      %v1172 = vsel %vm1110, %v1087, %v1171
      %v1173 = vrot.slane %v1088, 7
      %v1174 = vsel %vm1113, %v1173, %v1172
      %v1175 = vrot.slane %v1089, 6
      %v1176 = vsel %vm1116, %v1175, %v1174
      %v1177 = vrot.slane %v1090, 5
      %v1178 = vsel %vm1119, %v1177, %v1176
      %v1179 = vrot.slane %v1091, 4
      %v1180 = vsel %vm1122, %v1179, %v1178
      %1181 = vrot.lane.b32.xlu0 %v1180, 62
      %v1182 = vpop.permute.xlu0 %1181
      %vm1184 = vcmask 572912
      %1185 = vst.msk [vmem:[#allocation2] sm:$0xff] %vm1184, %v1182
      %v1186 = vrot.slane %v1084, 4
      %v1187 = vrot.slane %v1085, 3
      %v1188 = vsel %vm1104, %v1187, %v1186
      %v1189 = vrot.slane %v1086, 2
      %v1190 = vsel %vm1107, %v1189, %v1188
      %v1191 = vrot.slane %v1087, 1
      %v1192 = vsel %vm1110, %v1191, %v1190
      %v1193 = vsel %vm1113, %v1088, %v1192
      %v1194 = vrot.slane %v1089, 7
      %v1195 = vsel %vm1116, %v1194, %v1193
      %v1196 = vrot.slane %v1090, 6
      %v1197 = vsel %vm1119, %v1196, %v1195
      %v1198 = vrot.slane %v1091, 5
      %v1199 = vsel %vm1122, %v1198, %v1197
      %1200 = vrot.lane.b32.xlu0 %v1199, 74
      %v1201 = vpop.permute.xlu0 %1200
      %vm1203 = vcmask 671312
      %1204 = vst.msk [vmem:[#allocation2] sm:$0xff] %vm1203, %v1201
      %v1205 = vrot.slane %v1084, 5
      %v1206 = vrot.slane %v1085, 4
      %v1207 = vsel %vm1104, %v1206, %v1205
      %v1208 = vrot.slane %v1086, 3
      %v1209 = vsel %vm1107, %v1208, %v1207
      %v1210 = vrot.slane %v1087, 2
      %v1211 = vsel %vm1110, %v1210, %v1209
      %v1212 = vrot.slane %v1088, 1
      %v1213 = vsel %vm1113, %v1212, %v1211
      %v1214 = vsel %vm1116, %v1089, %v1213
      %v1215 = vrot.slane %v1090, 7
      %v1216 = vsel %vm1119, %v1215, %v1214
      %v1217 = vrot.slane %v1091, 6
      %v1218 = vsel %vm1122, %v1217, %v1216
      %1219 = vrot.lane.b32.xlu0 %v1218, 86
      %v1220 = vpop.permute.xlu0 %1219
      %vm1222 = vcmask 769712
      %1223 = vst.msk [vmem:[#allocation2] sm:$0xff] %vm1222, %v1220
      %v1224 = vrot.slane %v1084, 6
      %v1225 = vrot.slane %v1085, 5
      %v1226 = vsel %vm1104, %v1225, %v1224
      %v1227 = vrot.slane %v1086, 4
      %v1228 = vsel %vm1107, %v1227, %v1226
      %v1229 = vrot.slane %v1087, 3
      %v1230 = vsel %vm1110, %v1229, %v1228
      %v1231 = vrot.slane %v1088, 2
      %v1232 = vsel %vm1113, %v1231, %v1230
      %v1233 = vrot.slane %v1089, 1
      %v1234 = vsel %vm1116, %v1233, %v1232
      %v1235 = vsel %vm1119, %v1090, %v1234
      %v1236 = vrot.slane %v1091, 7
      %v1237 = vsel %vm1122, %v1236, %v1235
      %1238 = vrot.lane.b32.xlu0 %v1237, 98
      %v1239 = vpop.permute.xlu0 %1238
      %vm1241 = vcmask 868112
      %1242 = vst.msk [vmem:[#allocation2] sm:$0xff] %vm1241, %v1239
      %v1243 = vrot.slane %v1084, 7
      %v1244 = vrot.slane %v1085, 6
      %v1245 = vsel %vm1104, %v1244, %v1243
      %v1246 = vrot.slane %v1086, 5
      %v1247 = vsel %vm1107, %v1246, %v1245
      %v1248 = vrot.slane %v1087, 4
      %v1249 = vsel %vm1110, %v1248, %v1247
      %v1250 = vrot.slane %v1088, 3
      %v1251 = vsel %vm1113, %v1250, %v1249
      %v1252 = vrot.slane %v1089, 2
      %v1253 = vsel %vm1116, %v1252, %v1251
      %v1254 = vrot.slane %v1090, 1
      %v1255 = vsel %vm1119, %v1254, %v1253
      %v1256 = vsel %vm1122, %v1091, %v1255
      %1257 = vrot.lane.b32.xlu0 %v1256, 110
      %v1258 = vpop.permute.xlu0 %1257
      %vm1260 = vcmask 966512
      %1261 = vst.msk [vmem:[#allocation2] sm:$0xff] %vm1260, %v1258
      %v1262 = vld [vmem:[#allocation2] sm:$0xff]
      %v1263 = vld [vmem:[#allocation2 + $0x8] sm:$0xff]
      %1265 = vrot.lane.b32.xlu0 %v1262, 127
      %v1266 = vpop.permute.xlu0 %1265
      %1268 = vrot.lane.b32.xlu0 %v1262, 126
      %v1269 = vpop.permute.xlu0 %1268
      %1271 = vrot.lane.b32.xlu0 %v1262, 125
      %v1272 = vpop.permute.xlu0 %1271
      %1274 = vrot.lane.b32.xlu0 %v1262, 124
      %v1275 = vpop.permute.xlu0 %1274
      %1277 = vrot.lane.b32.xlu0 %v1262, 116
      %v1278 = vpop.permute.xlu0 %1277
      %1280 = vrot.lane.b32.xlu0 %v1262, 115
      %v1281 = vpop.permute.xlu0 %1280
      %1283 = vrot.lane.b32.xlu0 %v1262, 114
      %v1284 = vpop.permute.xlu0 %1283
      %1286 = vrot.lane.b32.xlu0 %v1262, 113
      %v1287 = vpop.permute.xlu0 %1286
      %1289 = vrot.lane.b32.xlu0 %v1262, 112
      %v1290 = vpop.permute.xlu0 %1289
      %1292 = vrot.lane.b32.xlu0 %v1262, 104
      %v1293 = vpop.permute.xlu0 %1292
      %1295 = vrot.lane.b32.xlu0 %v1262, 103
      %v1296 = vpop.permute.xlu0 %1295
      %1298 = vrot.lane.b32.xlu0 %v1262, 102
      %v1299 = vpop.permute.xlu0 %1298
      %1301 = vrot.lane.b32.xlu0 %v1262, 101
      %v1302 = vpop.permute.xlu0 %1301
      %1304 = vrot.lane.b32.xlu0 %v1262, 100
      %v1305 = vpop.permute.xlu0 %1304
      %1308 = vrot.lane.b32.xlu0 %v1262, 92
      %v1309 = vpop.permute.xlu0 %1308
      %1310 = vrot.lane.b32.xlu0 %v1263, 92
      %v1311 = vpop.permute.xlu0 %1310
      %vm1312 = vcmask 752640
      %v1313 = vsel %vm1312, %v1309, %v1311
      %1315 = vrot.lane.b32.xlu0 %v1263, 127
      %v1316 = vpop.permute.xlu0 %1315
      %v1317 = vsel %vm434, %v1266, %v1316
      %1318 = vrot.lane.b32.xlu0 %v1263, 126
      %v1319 = vpop.permute.xlu0 %1318
      %v1320 = vsel %vm444, %v1269, %v1319
      %1321 = vrot.lane.b32.xlu0 %v1263, 125
      %v1322 = vpop.permute.xlu0 %1321
      %vm1323 = vcmask 1022976
      %v1324 = vsel %vm1323, %v1272, %v1322
      %1325 = vrot.lane.b32.xlu0 %v1262, 117
      %v1326 = vpop.permute.xlu0 %1325
      %1327 = vrot.lane.b32.xlu0 %v1263, 117
      %v1328 = vpop.permute.xlu0 %1327
      %vm1329 = vcmask 957440
      %v1330 = vsel %vm1329, %v1326, %v1328
      %1331 = vrot.lane.b32.xlu0 %v1263, 116
      %v1332 = vpop.permute.xlu0 %1331
      %vm1333 = vcmask 949248
      %v1334 = vsel %vm1333, %v1278, %v1332
      %1335 = vrot.lane.b32.xlu0 %v1263, 115
      %v1336 = vpop.permute.xlu0 %1335
      %vm1337 = vcmask 941056
      %v1338 = vsel %vm1337, %v1281, %v1336
      %1339 = vrot.lane.b32.xlu0 %v1263, 114
      %v1340 = vpop.permute.xlu0 %1339
      %vm1341 = vcmask 932864
      %v1342 = vsel %vm1341, %v1284, %v1340
      %1343 = vrot.lane.b32.xlu0 %v1263, 113
      %v1344 = vpop.permute.xlu0 %1343
      %vm1345 = vcmask 924672
      %v1346 = vsel %vm1345, %v1287, %v1344
      %1347 = vrot.lane.b32.xlu0 %v1262, 91
      %v1348 = vpop.permute.xlu0 %1347
      %1349 = vrot.lane.b32.xlu0 %v1263, 91
      %v1350 = vpop.permute.xlu0 %1349
      %1351 = vrot.lane.b32.xlu0 %v1317, 91
      %v1352 = vpop.permute.xlu0 %1351
      %1353 = vrot.lane.b32.xlu0 %v1316, 91
      %v1354 = vpop.permute.xlu0 %1353
      %1355 = vrot.lane.b32.xlu0 %v1320, 91
      %v1356 = vpop.permute.xlu0 %1355
      %1357 = vrot.lane.b32.xlu0 %v1319, 91
      %v1358 = vpop.permute.xlu0 %1357
      %1359 = vrot.lane.b32.xlu0 %v1324, 91
      %v1360 = vpop.permute.xlu0 %1359
      %1361 = vrot.lane.b32.xlu0 %v1322, 91
      %v1362 = vpop.permute.xlu0 %1361
      %1363 = vrot.lane.b32.xlu0 %v1330, 91
      %v1364 = vpop.permute.xlu0 %1363
      %1365 = vrot.lane.b32.xlu0 %v1328, 91
      %v1366 = vpop.permute.xlu0 %1365
      %1367 = vrot.lane.b32.xlu0 %v1334, 91
      %v1368 = vpop.permute.xlu0 %1367
      %1369 = vrot.lane.b32.xlu0 %v1332, 91
      %v1370 = vpop.permute.xlu0 %1369
      %1371 = vrot.lane.b32.xlu0 %v1338, 91
      %v1372 = vpop.permute.xlu0 %1371
      %1373 = vrot.lane.b32.xlu0 %v1336, 91
      %v1374 = vpop.permute.xlu0 %1373
      %1375 = vrot.lane.b32.xlu0 %v1342, 91
      %v1376 = vpop.permute.xlu0 %1375
      %1377 = vrot.lane.b32.xlu0 %v1340, 91
      %v1378 = vpop.permute.xlu0 %1377
      %1379 = vrot.lane.b32.xlu0 %v1346, 91
      %v1380 = vpop.permute.xlu0 %1379
      %1381 = vrot.lane.b32.xlu0 %v1344, 91
      %v1382 = vpop.permute.xlu0 %1381
      %vm1383 = vcmask 744448
      %v1384 = vsel %vm1383, %v1348, %v1350
      %v1385 = vsel %vm1383, %v1352, %v1354
      %v1386 = vsel %vm1383, %v1356, %v1358
      %v1387 = vsel %vm1383, %v1360, %v1362
      %v1388 = vsel %vm1383, %v1364, %v1366
      %v1389 = vsel %vm1383, %v1368, %v1370
      %v1390 = vsel %vm1383, %v1372, %v1374
      %v1391 = vsel %vm1383, %v1376, %v1378
      %v1392 = vsel %vm1383, %v1380, %v1382
      %v1402 = vpack.c.bf16 %v1266, %v1262
      %v1403 = vpack.c.bf16 %v1272, %v1269
      %v1404 = vpack.c.bf16 %v1278, %v1275
      %v1405 = vpack.c.bf16 %v1284, %v1281
      %v1406 = vpack.c.bf16 %v1290, %v1287
      %v1407 = vpack.c.bf16 %v1296, %v1293
      %v1408 = vpack.c.bf16 %v1302, %v1299
      %v1409 = vpack.c.bf16 %v1313, %v1305
      %v1410 = vpack.c.bf16 %v1385, %v1384
      %v1411 = vpack.c.bf16 %v1387, %v1386
      %v1412 = vpack.c.bf16 %v1389, %v1388
      %v1413 = vpack.c.bf16 %v1391, %v1390
      %v1414 = vpack.c.bf16 %v1392, %v1392
      %v1415 = vld [vmem:[%s3] sm:$0xff]
      %v1416 = vld [vmem:[%s4] sm:$0xff]
      %1418 = vset.pattern.permute.xlu0 0
      %1419 = vperm.xlu0 %1418, %v1416
      %v1420 = vpop.permute.xlu0 %1419
      %v1423 = vunpack.c.l.b16 %v1415
      %v1424 = vunpack.c.h.b16 %v1415
      %v1425 = vpack.c.b16 %v1423, %v1423
      %v1426 = vpack.c.b16 %v1424, %v1424
      %vm1428 = vcmask 588800
      %v1430 = vsel %vm1428, %v1426, 0
      %v1433 = vsel %vm817, %v1414, 0
      %1435 = vmatprep.subr.bf16.mxu0 0
      %1436 = vmatpush1.bf16.msra.mxu0 %v1402
      %1437 = vmatprep.subr.bf16.mxu0 0
      %1438 = vmatpush1.bf16.msra.mxu0 %v1403
      %1439 = vmatprep.subr.bf16.mxu0 0
      %1440 = vmatpush1.bf16.msra.mxu0 %v1404
      %1441 = vmatprep.subr.bf16.mxu0 0
      %1442 = vmatpush1.bf16.msra.mxu0 %v1405
      %1443 = vmatprep.subr.bf16.mxu0 0
      %1444 = vmatpush1.bf16.msra.mxu0 %v1406
      %1445 = vmatprep.subr.bf16.mxu0 0
      %1446 = vmatpush1.bf16.msra.mxu0 %v1407
      %1447 = vmatprep.subr.bf16.mxu0 0
      %1448 = vmatpush1.bf16.msra.mxu0 %v1408
      %1449 = vmatprep.subr.bf16.mxu0 0
      %1450 = vmatpush1.bf16.msra.mxu0 %v1409
      %1451 = vmatprep.subr.bf16.mxu0 0
      %1452 = vmatpush1.bf16.msra.mxu0 %v1410
      %1453 = vmatprep.subr.bf16.mxu0 0
      %1454 = vmatpush1.bf16.msra.mxu0 %v1411
      %1455 = vmatprep.subr.bf16.mxu0 0
      %1456 = vmatpush1.bf16.msra.mxu0 %v1412
      %1457 = vmatprep.subr.bf16.mxu0 0
      %1458 = vmatpush1.bf16.msra.mxu0 %v1413
      %1459 = vmatprep.subr.bf16.mxu0 0
      %1460 = vmatpush1.bf16.msra.mxu0 %v1433
      %1461 = vmatprep.subr.bf16.mxu0 0
      %1462 = vmatpush1.bf16.msra.mxu0 0
      %1463 = vmatprep.subr.bf16.mxu0 0
      %1464 = vmatpush1.bf16.msra.mxu0 0
      %1465 = vmatprep.subr.bf16.mxu0 0
      %1466 = vmatpush1.bf16.msra.mxu0 0
      %1467 = vmatprep.mubr.bf16.mxu0 %v1430
      %1468 = vmatmul.mubr.bf16.gmra.mrb[0].mxu0 %v1425
      %v1469 = vpop.f32.mrb[0].mxu0
      %v1470 = vadd.f32 %v1420, %v1469
      %v1471 = vpop.f32.mrb[0].mxu0
      %v1472 = vpop.f32.mrb[0].mxu0
      %v1473 = vpop.f32.mrb[0].mxu0
      %1474 = vdwg.mxu0
      %v1475 = vmax.f32 %v1470, 0.0
      %1477 = vrot.lane.b32.xlu0 %v1475, 116
      %v1478 = vpop.permute.xlu0 %1477
      %v1480 = vmax.f32 %v1475, %v1478
      %1481 = vrot.lane.b32.xlu0 %v1475, 104
      %v1482 = vpop.permute.xlu0 %1481
      %v1484 = vmax.f32 %v1480, %v1482
      %1486 = vrot.lane.b32.xlu0 %v1484, 127
      %v1487 = vpop.permute.xlu0 %1486
      %v1489 = vmax.f32 %v1484, %v1487
      %1490 = vrot.lane.b32.xlu0 %v1484, 126
      %v1491 = vpop.permute.xlu0 %1490
      %v1493 = vmax.f32 %v1489, %v1491
      %v1495 = vcombine.high %v1493, %v1493
      %v1497 = vunpack.c.l.s4 1966171168
      %v1498 = vunpack.c.0.s8 %v1497
      %v1499 = vlaneseq
      %v1500 = vshrl.u32 %v1499, 7
      %v1501 = vsub.s32 %v1498, %v1500
      %v1502 = vrot.slane %v1493, %v1501
      %v1504 = vunpack.c.l.s4 1966171168
      %v1505 = vunpack.c.0.s8 %v1504
      %v1506 = vlaneseq
      %v1507 = vshrl.u32 %v1506, 7
      %v1508 = vsub.s32 %v1505, %v1507
      %v1509 = vrot.slane %v1495, %v1508
      %v1510 = vcombine.high %v1502, %v1502
      %v1511 = vcombine.high %v1509, %v1509
      %v1513 = vunpack.c.l.s4 1966171168
      %v1514 = vunpack.c.0.s8 %v1513
      %v1515 = vlaneseq
      %v1516 = vshrl.u32 %v1515, 7
      %v1517 = vsub.s32 %v1514, %v1516
      %v1518 = vrot.slane %v1502, %v1517
      %v1520 = vunpack.c.l.s4 1966171168
      %v1521 = vunpack.c.0.s8 %v1520
      %v1522 = vlaneseq
      %v1523 = vshrl.u32 %v1522, 7
      %v1524 = vsub.s32 %v1521, %v1523
      %v1525 = vrot.slane %v1509, %v1524
      %v1527 = vunpack.c.l.s4 1966171168
      %v1528 = vunpack.c.0.s8 %v1527
      %v1529 = vlaneseq
      %v1530 = vshrl.u32 %v1529, 7
      %v1531 = vsub.s32 %v1528, %v1530
      %v1532 = vrot.slane %v1510, %v1531
      %v1534 = vunpack.c.l.s4 1966171168
      %v1535 = vunpack.c.0.s8 %v1534
      %v1536 = vlaneseq
      %v1537 = vshrl.u32 %v1536, 7
      %v1538 = vsub.s32 %v1535, %v1537
      %v1539 = vrot.slane %v1511, %v1538
      %v1540 = vcombine.high %v1518, %v1518
      %v1541 = vcombine.high %v1525, %v1525
      %v1542 = vcombine.high %v1532, %v1532
      %v1543 = vcombine.high %v1539, %v1539
      %v1552 = vlaneseq
      %v1553 = vshrl.u32 %v1552, 7
      %v1554 = vsub.s32 0, %v1553
      %v1555 = vrot.slane %v1518, %v1554
      %v1556 = vlaneseq
      %v1557 = vshrl.u32 %v1556, 7
      %v1558 = vsub.s32 0, %v1557
      %v1559 = vrot.slane %v1532, %v1558
      %v1560 = vlaneseq
      %v1561 = vshrl.u32 %v1560, 7
      %v1562 = vsub.s32 0, %v1561
      %v1563 = vrot.slane %v1540, %v1562
      %v1564 = vlaneseq
      %v1565 = vshrl.u32 %v1564, 7
      %v1566 = vsub.s32 0, %v1565
      %v1567 = vrot.slane %v1542, %v1566
      %v1568 = vlaneseq
      %v1569 = vshrl.u32 %v1568, 7
      %v1570 = vsub.s32 0, %v1569
      %v1571 = vrot.slane %v1525, %v1570
      %v1572 = vlaneseq
      %v1573 = vshrl.u32 %v1572, 7
      %v1574 = vsub.s32 0, %v1573
      %v1575 = vrot.slane %v1539, %v1574
      %v1576 = vlaneseq
      %v1577 = vshrl.u32 %v1576, 7
      %v1578 = vsub.s32 0, %v1577
      %v1579 = vrot.slane %v1541, %v1578
      %v1580 = vlaneseq
      %v1581 = vshrl.u32 %v1580, 7
      %v1582 = vsub.s32 0, %v1581
      %v1583 = vrot.slane %v1543, %v1582
      %1584 = vrot.lane.b32.xlu0 %v1555, 104
      %v1585 = vpop.permute.xlu0 %1584
      %1586 = vrot.lane.b32.xlu0 %v1559, 104
      %v1587 = vpop.permute.xlu0 %1586
      %1588 = vrot.lane.b32.xlu0 %v1563, 104
      %v1589 = vpop.permute.xlu0 %1588
      %1590 = vrot.lane.b32.xlu0 %v1567, 104
      %v1591 = vpop.permute.xlu0 %1590
      %1592 = vrot.lane.b32.xlu0 %v1571, 104
      %v1593 = vpop.permute.xlu0 %1592
      %1594 = vrot.lane.b32.xlu0 %v1575, 104
      %v1595 = vpop.permute.xlu0 %1594
      %1596 = vrot.lane.b32.xlu0 %v1579, 104
      %v1597 = vpop.permute.xlu0 %1596
      %1598 = vrot.lane.b32.xlu0 %v1583, 104
      %v1599 = vpop.permute.xlu0 %1598
      %1608 = vrot.lane.b32.xlu0 %v1555, 80
      %v1609 = vpop.permute.xlu0 %1608
      %1610 = vrot.lane.b32.xlu0 %v1559, 80
      %v1611 = vpop.permute.xlu0 %1610
      %1612 = vrot.lane.b32.xlu0 %v1563, 80
      %v1613 = vpop.permute.xlu0 %1612
      %1614 = vrot.lane.b32.xlu0 %v1567, 80
      %v1615 = vpop.permute.xlu0 %1614
      %1616 = vrot.lane.b32.xlu0 %v1571, 80
      %v1617 = vpop.permute.xlu0 %1616
      %1618 = vrot.lane.b32.xlu0 %v1575, 80
      %v1619 = vpop.permute.xlu0 %1618
      %1620 = vrot.lane.b32.xlu0 %v1579, 80
      %v1621 = vpop.permute.xlu0 %1620
      %1622 = vrot.lane.b32.xlu0 %v1583, 80
      %v1623 = vpop.permute.xlu0 %1622
      %v1632 = vsel %vm790, %v1518, %v1585
      %v1633 = vsel %vm790, %v1532, %v1587
      %v1634 = vsel %vm790, %v1540, %v1589
      %v1635 = vsel %vm790, %v1542, %v1591
      %v1636 = vsel %vm790, %v1525, %v1593
      %v1637 = vsel %vm790, %v1539, %v1595
      %v1638 = vsel %vm790, %v1541, %v1597
      %v1639 = vsel %vm790, %v1543, %v1599
      %v1640 = vsel %vm799, %v1632, %v1609
      %v1641 = vsel %vm799, %v1633, %v1611
      %v1642 = vsel %vm799, %v1634, %v1613
      %v1643 = vsel %vm799, %v1635, %v1615
      %v1644 = vsel %vm799, %v1636, %v1617
      %v1645 = vsel %vm799, %v1637, %v1619
      %v1646 = vsel %vm799, %v1638, %v1621
      %v1647 = vsel %vm799, %v1639, %v1623
      %1656 = vrot.lane.b32.xlu0 %v1640, 127
      %v1657 = vpop.permute.xlu0 %1656
      %1658 = vrot.lane.b32.xlu0 %v1641, 127
      %v1659 = vpop.permute.xlu0 %1658
      %1660 = vrot.lane.b32.xlu0 %v1642, 127
      %v1661 = vpop.permute.xlu0 %1660
      %1662 = vrot.lane.b32.xlu0 %v1643, 127
      %v1663 = vpop.permute.xlu0 %1662
      %1664 = vrot.lane.b32.xlu0 %v1644, 127
      %v1665 = vpop.permute.xlu0 %1664
      %1666 = vrot.lane.b32.xlu0 %v1645, 127
      %v1667 = vpop.permute.xlu0 %1666
      %1668 = vrot.lane.b32.xlu0 %v1646, 127
      %v1669 = vpop.permute.xlu0 %1668
      %1670 = vrot.lane.b32.xlu0 %v1647, 127
      %v1671 = vpop.permute.xlu0 %1670
      %1680 = vrot.lane.b32.xlu0 %v1640, 126
      %v1681 = vpop.permute.xlu0 %1680
      %1682 = vrot.lane.b32.xlu0 %v1641, 126
      %v1683 = vpop.permute.xlu0 %1682
      %1684 = vrot.lane.b32.xlu0 %v1642, 126
      %v1685 = vpop.permute.xlu0 %1684
      %1686 = vrot.lane.b32.xlu0 %v1643, 126
      %v1687 = vpop.permute.xlu0 %1686
      %1688 = vrot.lane.b32.xlu0 %v1644, 126
      %v1689 = vpop.permute.xlu0 %1688
      %1690 = vrot.lane.b32.xlu0 %v1645, 126
      %v1691 = vpop.permute.xlu0 %1690
      %1692 = vrot.lane.b32.xlu0 %v1646, 126
      %v1693 = vpop.permute.xlu0 %1692
      %1694 = vrot.lane.b32.xlu0 %v1647, 126
      %v1695 = vpop.permute.xlu0 %1694
      %v1704 = vsel %vm1029, %v1640, %v1657
      %v1705 = vsel %vm1029, %v1641, %v1659
      %v1706 = vsel %vm1029, %v1642, %v1661
      %v1707 = vsel %vm1029, %v1643, %v1663
      %v1708 = vsel %vm1029, %v1644, %v1665
      %v1709 = vsel %vm1029, %v1645, %v1667
      %v1710 = vsel %vm1029, %v1646, %v1669
      %v1711 = vsel %vm1029, %v1647, %v1671
      %v1712 = vsel %vm1038, %v1704, %v1681
      %v1713 = vsel %vm1038, %v1705, %v1683
      %v1714 = vsel %vm1038, %v1706, %v1685
      %v1715 = vsel %vm1038, %v1707, %v1687
      %v1716 = vsel %vm1038, %v1708, %v1689
      %v1717 = vsel %vm1038, %v1709, %v1691
      %v1718 = vsel %vm1038, %v1710, %v1693
      %v1719 = vsel %vm1038, %v1711, %v1695
      %vm1720 = vcmask 9216
      %v1721 = vsel %vm1720, %v1712, 0.0
      %1722 = vadd.xlane.f32.xlu0 %v1721
      %v1723 = vpop.xlane.xlu0 %1722
      %v1724 = vsel %vm1720, %v1713, 0.0
      %1725 = vadd.xlane.f32.xlu0 %v1724
      %v1726 = vpop.xlane.xlu0 %1725
      %v1727 = vsel %vm1720, %v1714, 0.0
      %1728 = vadd.xlane.f32.xlu0 %v1727
      %v1729 = vpop.xlane.xlu0 %1728
      %v1730 = vsel %vm1720, %v1715, 0.0
      %1731 = vadd.xlane.f32.xlu0 %v1730
      %v1732 = vpop.xlane.xlu0 %1731
      %v1733 = vsel %vm1720, %v1716, 0.0
      %1734 = vadd.xlane.f32.xlu0 %v1733
      %v1735 = vpop.xlane.xlu0 %1734
      %v1736 = vsel %vm1720, %v1717, 0.0
      %1737 = vadd.xlane.f32.xlu0 %v1736
      %v1738 = vpop.xlane.xlu0 %1737
      %v1739 = vsel %vm1720, %v1718, 0.0
      %1740 = vadd.xlane.f32.xlu0 %v1739
      %v1741 = vpop.xlane.xlu0 %1740
      %v1742 = vsel %vm1720, %v1719, 0.0
      %1743 = vadd.xlane.f32.xlu0 %v1742
      %v1744 = vpop.xlane.xlu0 %1743
      %v1745 = vsel %vm799, %v1723, 0.0
      %v1746 = vrot.slane %v1745, 4
      %v1747 = vadd.f32 %v1745, %v1746
      %v1748 = vrot.slane %v1747, 2
      %v1749 = vadd.f32 %v1747, %v1748
      %v1750 = vrot.slane %v1749, 1
      %v1751 = vadd.f32 %v1749, %v1750
      %v1752 = vsel %vm799, %v1726, 0.0
      %v1753 = vrot.slane %v1752, 4
      %v1754 = vadd.f32 %v1752, %v1753
      %v1755 = vrot.slane %v1754, 2
      %v1756 = vadd.f32 %v1754, %v1755
      %v1757 = vrot.slane %v1756, 1
      %v1758 = vadd.f32 %v1756, %v1757
      %v1759 = vsel %vm799, %v1729, 0.0
      %v1760 = vrot.slane %v1759, 4
      %v1761 = vadd.f32 %v1759, %v1760
      %v1762 = vrot.slane %v1761, 2
      %v1763 = vadd.f32 %v1761, %v1762
      %v1764 = vrot.slane %v1763, 1
      %v1765 = vadd.f32 %v1763, %v1764
      %v1766 = vsel %vm799, %v1732, 0.0
      %v1767 = vrot.slane %v1766, 4
      %v1768 = vadd.f32 %v1766, %v1767
      %v1769 = vrot.slane %v1768, 2
      %v1770 = vadd.f32 %v1768, %v1769
      %v1771 = vrot.slane %v1770, 1
      %v1772 = vadd.f32 %v1770, %v1771
      %v1773 = vsel %vm799, %v1735, 0.0
      %v1774 = vrot.slane %v1773, 4
      %v1775 = vadd.f32 %v1773, %v1774
      %v1776 = vrot.slane %v1775, 2
      %v1777 = vadd.f32 %v1775, %v1776
      %v1778 = vrot.slane %v1777, 1
      %v1779 = vadd.f32 %v1777, %v1778
      %v1780 = vsel %vm799, %v1738, 0.0
      %v1781 = vrot.slane %v1780, 4
      %v1782 = vadd.f32 %v1780, %v1781
      %v1783 = vrot.slane %v1782, 2
      %v1784 = vadd.f32 %v1782, %v1783
      %v1785 = vrot.slane %v1784, 1
      %v1786 = vadd.f32 %v1784, %v1785
      %v1787 = vsel %vm799, %v1741, 0.0
      %v1788 = vrot.slane %v1787, 4
      %v1789 = vadd.f32 %v1787, %v1788
      %v1790 = vrot.slane %v1789, 2
      %v1791 = vadd.f32 %v1789, %v1790
      %v1792 = vrot.slane %v1791, 1
      %v1793 = vadd.f32 %v1791, %v1792
      %v1794 = vsel %vm799, %v1744, 0.0
      %v1795 = vrot.slane %v1794, 4
      %v1796 = vadd.f32 %v1794, %v1795
      %v1797 = vrot.slane %v1796, 2
      %v1798 = vadd.f32 %v1796, %v1797
      %v1799 = vrot.slane %v1798, 1
      %v1800 = vadd.f32 %v1798, %v1799
      %v1801 = vmul.f32 %v1751, 0.25
      %v1802 = vmul.f32 %v1758, 0.25
      %v1803 = vmul.f32 %v1765, 0.25
      %v1804 = vmul.f32 %v1772, 0.25
      %v1805 = vmul.f32 %v1779, 0.25
      %v1806 = vmul.f32 %v1786, 0.25
      %v1807 = vmul.f32 %v1793, 0.25
      %v1808 = vmul.f32 %v1800, 0.25
      %1817 = vrot.lane.b32.xlu0 %v1712, 127
      %v1818 = vpop.permute.xlu0 %1817
      %1819 = vrot.lane.b32.xlu0 %v1713, 127
      %v1820 = vpop.permute.xlu0 %1819
      %1821 = vrot.lane.b32.xlu0 %v1714, 127
      %v1822 = vpop.permute.xlu0 %1821
      %1823 = vrot.lane.b32.xlu0 %v1715, 127
      %v1824 = vpop.permute.xlu0 %1823
      %1825 = vrot.lane.b32.xlu0 %v1716, 127
      %v1826 = vpop.permute.xlu0 %1825
      %1827 = vrot.lane.b32.xlu0 %v1717, 127
      %v1828 = vpop.permute.xlu0 %1827
      %1829 = vrot.lane.b32.xlu0 %v1718, 127
      %v1830 = vpop.permute.xlu0 %1829
      %1831 = vrot.lane.b32.xlu0 %v1719, 127
      %v1832 = vpop.permute.xlu0 %1831
      %v1841 = vsel %vm1720, %v1818, 0.0
      %1842 = vadd.xlane.f32.xlu0 %v1841
      %v1843 = vpop.xlane.xlu0 %1842
      %v1844 = vsel %vm1720, %v1820, 0.0
      %1845 = vadd.xlane.f32.xlu0 %v1844
      %v1846 = vpop.xlane.xlu0 %1845
      %v1847 = vsel %vm1720, %v1822, 0.0
      %1848 = vadd.xlane.f32.xlu0 %v1847
      %v1849 = vpop.xlane.xlu0 %1848
      %v1850 = vsel %vm1720, %v1824, 0.0
      %1851 = vadd.xlane.f32.xlu0 %v1850
      %v1852 = vpop.xlane.xlu0 %1851
      %v1853 = vsel %vm1720, %v1826, 0.0
      %1854 = vadd.xlane.f32.xlu0 %v1853
      %v1855 = vpop.xlane.xlu0 %1854
      %v1856 = vsel %vm1720, %v1828, 0.0
      %1857 = vadd.xlane.f32.xlu0 %v1856
      %v1858 = vpop.xlane.xlu0 %1857
      %v1859 = vsel %vm1720, %v1830, 0.0
      %1860 = vadd.xlane.f32.xlu0 %v1859
      %v1861 = vpop.xlane.xlu0 %1860
      %v1862 = vsel %vm1720, %v1832, 0.0
      %1863 = vadd.xlane.f32.xlu0 %v1862
      %v1864 = vpop.xlane.xlu0 %1863
      %v1865 = vsel %vm799, %v1843, 0.0
      %v1866 = vrot.slane %v1865, 4
      %v1867 = vadd.f32 %v1865, %v1866
      %v1868 = vrot.slane %v1867, 2
      %v1869 = vadd.f32 %v1867, %v1868
      %v1870 = vrot.slane %v1869, 1
      %v1871 = vadd.f32 %v1869, %v1870
      %v1872 = vsel %vm799, %v1846, 0.0
      %v1873 = vrot.slane %v1872, 4
      %v1874 = vadd.f32 %v1872, %v1873
      %v1875 = vrot.slane %v1874, 2
      %v1876 = vadd.f32 %v1874, %v1875
      %v1877 = vrot.slane %v1876, 1
      %v1878 = vadd.f32 %v1876, %v1877
      %v1879 = vsel %vm799, %v1849, 0.0
      %v1880 = vrot.slane %v1879, 4
      %v1881 = vadd.f32 %v1879, %v1880
      %v1882 = vrot.slane %v1881, 2
      %v1883 = vadd.f32 %v1881, %v1882
      %v1884 = vrot.slane %v1883, 1
      %v1885 = vadd.f32 %v1883, %v1884
      %v1886 = vsel %vm799, %v1852, 0.0
      %v1887 = vrot.slane %v1886, 4
      %v1888 = vadd.f32 %v1886, %v1887
      %v1889 = vrot.slane %v1888, 2
      %v1890 = vadd.f32 %v1888, %v1889
      %v1891 = vrot.slane %v1890, 1
      %v1892 = vadd.f32 %v1890, %v1891
      %v1893 = vsel %vm799, %v1855, 0.0
      %v1894 = vrot.slane %v1893, 4
      %v1895 = vadd.f32 %v1893, %v1894
      %v1896 = vrot.slane %v1895, 2
      %v1897 = vadd.f32 %v1895, %v1896
      %v1898 = vrot.slane %v1897, 1
      %v1899 = vadd.f32 %v1897, %v1898
      %v1900 = vsel %vm799, %v1858, 0.0
      %v1901 = vrot.slane %v1900, 4
      %v1902 = vadd.f32 %v1900, %v1901
      %v1903 = vrot.slane %v1902, 2
      %v1904 = vadd.f32 %v1902, %v1903
      %v1905 = vrot.slane %v1904, 1
      %v1906 = vadd.f32 %v1904, %v1905
      %v1907 = vsel %vm799, %v1861, 0.0
      %v1908 = vrot.slane %v1907, 4
      %v1909 = vadd.f32 %v1907, %v1908
      %v1910 = vrot.slane %v1909, 2
      %v1911 = vadd.f32 %v1909, %v1910
      %v1912 = vrot.slane %v1911, 1
      %v1913 = vadd.f32 %v1911, %v1912
      %v1914 = vsel %vm799, %v1864, 0.0
      %v1915 = vrot.slane %v1914, 4
      %v1916 = vadd.f32 %v1914, %v1915
      %v1917 = vrot.slane %v1916, 2
      %v1918 = vadd.f32 %v1916, %v1917
      %v1919 = vrot.slane %v1918, 1
      %v1920 = vadd.f32 %v1918, %v1919
      %v1921 = vmul.f32 %v1871, 0.25
      %v1922 = vmul.f32 %v1878, 0.25
      %v1923 = vmul.f32 %v1885, 0.25
      %v1924 = vmul.f32 %v1892, 0.25
      %v1925 = vmul.f32 %v1899, 0.25
      %v1926 = vmul.f32 %v1906, 0.25
      %v1927 = vmul.f32 %v1913, 0.25
      %v1928 = vmul.f32 %v1920, 0.25
      %vm1929 = vcmask 10241
      %v1930 = vsel %vm1929, %v1712, 0.0
      %1931 = vadd.xlane.f32.xlu0 %v1930
      %v1932 = vpop.xlane.xlu0 %1931
      %v1933 = vsel %vm1929, %v1713, 0.0
      %1934 = vadd.xlane.f32.xlu0 %v1933
      %v1935 = vpop.xlane.xlu0 %1934
      %v1936 = vsel %vm1929, %v1714, 0.0
      %1937 = vadd.xlane.f32.xlu0 %v1936
      %v1938 = vpop.xlane.xlu0 %1937
      %v1939 = vsel %vm1929, %v1715, 0.0
      %1940 = vadd.xlane.f32.xlu0 %v1939
      %v1941 = vpop.xlane.xlu0 %1940
      %v1942 = vsel %vm1929, %v1716, 0.0
      %1943 = vadd.xlane.f32.xlu0 %v1942
      %v1944 = vpop.xlane.xlu0 %1943
      %v1945 = vsel %vm1929, %v1717, 0.0
      %1946 = vadd.xlane.f32.xlu0 %v1945
      %v1947 = vpop.xlane.xlu0 %1946
      %v1948 = vsel %vm1929, %v1718, 0.0
      %1949 = vadd.xlane.f32.xlu0 %v1948
      %v1950 = vpop.xlane.xlu0 %1949
      %v1951 = vsel %vm1929, %v1719, 0.0
      %1952 = vadd.xlane.f32.xlu0 %v1951
      %v1953 = vpop.xlane.xlu0 %1952
      %v1962 = vrot.slane %v1932, 1
      %v1963 = vrot.slane %v1935, 1
      %v1964 = vrot.slane %v1938, 1
      %v1965 = vrot.slane %v1941, 1
      %v1966 = vrot.slane %v1944, 1
      %v1967 = vrot.slane %v1947, 1
      %v1968 = vrot.slane %v1950, 1
      %v1969 = vrot.slane %v1953, 1
      %v1978 = vsel %vm799, %v1962, 0.0
      %v1979 = vrot.slane %v1978, 4
      %v1980 = vadd.f32 %v1978, %v1979
      %v1981 = vrot.slane %v1980, 2
      %v1982 = vadd.f32 %v1980, %v1981
      %v1983 = vrot.slane %v1982, 1
      %v1984 = vadd.f32 %v1982, %v1983
      %v1985 = vsel %vm799, %v1963, 0.0
      %v1986 = vrot.slane %v1985, 4
      %v1987 = vadd.f32 %v1985, %v1986
      %v1988 = vrot.slane %v1987, 2
      %v1989 = vadd.f32 %v1987, %v1988
      %v1990 = vrot.slane %v1989, 1
      %v1991 = vadd.f32 %v1989, %v1990
      %v1992 = vsel %vm799, %v1964, 0.0
      %v1993 = vrot.slane %v1992, 4
      %v1994 = vadd.f32 %v1992, %v1993
      %v1995 = vrot.slane %v1994, 2
      %v1996 = vadd.f32 %v1994, %v1995
      %v1997 = vrot.slane %v1996, 1
      %v1998 = vadd.f32 %v1996, %v1997
      %v1999 = vsel %vm799, %v1965, 0.0
      %v2000 = vrot.slane %v1999, 4
      %v2001 = vadd.f32 %v1999, %v2000
      %v2002 = vrot.slane %v2001, 2
      %v2003 = vadd.f32 %v2001, %v2002
      %v2004 = vrot.slane %v2003, 1
      %v2005 = vadd.f32 %v2003, %v2004
      %v2006 = vsel %vm799, %v1966, 0.0
      %v2007 = vrot.slane %v2006, 4
      %v2008 = vadd.f32 %v2006, %v2007
      %v2009 = vrot.slane %v2008, 2
      %v2010 = vadd.f32 %v2008, %v2009
      %v2011 = vrot.slane %v2010, 1
      %v2012 = vadd.f32 %v2010, %v2011
      %v2013 = vsel %vm799, %v1967, 0.0
      %v2014 = vrot.slane %v2013, 4
      %v2015 = vadd.f32 %v2013, %v2014
      %v2016 = vrot.slane %v2015, 2
      %v2017 = vadd.f32 %v2015, %v2016
      %v2018 = vrot.slane %v2017, 1
      %v2019 = vadd.f32 %v2017, %v2018
      %v2020 = vsel %vm799, %v1968, 0.0
      %v2021 = vrot.slane %v2020, 4
      %v2022 = vadd.f32 %v2020, %v2021
      %v2023 = vrot.slane %v2022, 2
      %v2024 = vadd.f32 %v2022, %v2023
      %v2025 = vrot.slane %v2024, 1
      %v2026 = vadd.f32 %v2024, %v2025
      %v2027 = vsel %vm799, %v1969, 0.0
      %v2028 = vrot.slane %v2027, 4
      %v2029 = vadd.f32 %v2027, %v2028
      %v2030 = vrot.slane %v2029, 2
      %v2031 = vadd.f32 %v2029, %v2030
      %v2032 = vrot.slane %v2031, 1
      %v2033 = vadd.f32 %v2031, %v2032
      %v2034 = vmul.f32 %v1984, 0.25
      %v2035 = vmul.f32 %v1991, 0.25
      %v2036 = vmul.f32 %v1998, 0.25
      %v2037 = vmul.f32 %v2005, 0.25
      %v2038 = vmul.f32 %v2012, 0.25
      %v2039 = vmul.f32 %v2019, 0.25
      %v2040 = vmul.f32 %v2026, 0.25
      %v2041 = vmul.f32 %v2033, 0.25
      %v2042 = vsel %vm1929, %v1818, 0.0
      %2043 = vadd.xlane.f32.xlu0 %v2042
      %v2044 = vpop.xlane.xlu0 %2043
      %v2045 = vsel %vm1929, %v1820, 0.0
      %2046 = vadd.xlane.f32.xlu0 %v2045
      %v2047 = vpop.xlane.xlu0 %2046
      %v2048 = vsel %vm1929, %v1822, 0.0
      %2049 = vadd.xlane.f32.xlu0 %v2048
      %v2050 = vpop.xlane.xlu0 %2049
      %v2051 = vsel %vm1929, %v1824, 0.0
      %2052 = vadd.xlane.f32.xlu0 %v2051
      %v2053 = vpop.xlane.xlu0 %2052
      %v2054 = vsel %vm1929, %v1826, 0.0
      %2055 = vadd.xlane.f32.xlu0 %v2054
      %v2056 = vpop.xlane.xlu0 %2055
      %v2057 = vsel %vm1929, %v1828, 0.0
      %2058 = vadd.xlane.f32.xlu0 %v2057
      %v2059 = vpop.xlane.xlu0 %2058
      %v2060 = vsel %vm1929, %v1830, 0.0
      %2061 = vadd.xlane.f32.xlu0 %v2060
      %v2062 = vpop.xlane.xlu0 %2061
      %v2063 = vsel %vm1929, %v1832, 0.0
      %2064 = vadd.xlane.f32.xlu0 %v2063
      %v2065 = vpop.xlane.xlu0 %2064
      %v2074 = vrot.slane %v2044, 1
      %v2075 = vrot.slane %v2047, 1
      %v2076 = vrot.slane %v2050, 1
      %v2077 = vrot.slane %v2053, 1
      %v2078 = vrot.slane %v2056, 1
      %v2079 = vrot.slane %v2059, 1
      %v2080 = vrot.slane %v2062, 1
      %v2081 = vrot.slane %v2065, 1
      %v2090 = vsel %vm799, %v2074, 0.0
      %v2091 = vrot.slane %v2090, 4
      %v2092 = vadd.f32 %v2090, %v2091
      %v2093 = vrot.slane %v2092, 2
      %v2094 = vadd.f32 %v2092, %v2093
      %v2095 = vrot.slane %v2094, 1
      %v2096 = vadd.f32 %v2094, %v2095
      %v2097 = vsel %vm799, %v2075, 0.0
      %v2098 = vrot.slane %v2097, 4
      %v2099 = vadd.f32 %v2097, %v2098
      %v2100 = vrot.slane %v2099, 2
      %v2101 = vadd.f32 %v2099, %v2100
      %v2102 = vrot.slane %v2101, 1
      %v2103 = vadd.f32 %v2101, %v2102
      %v2104 = vsel %vm799, %v2076, 0.0
      %v2105 = vrot.slane %v2104, 4
      %v2106 = vadd.f32 %v2104, %v2105
      %v2107 = vrot.slane %v2106, 2
      %v2108 = vadd.f32 %v2106, %v2107
      %v2109 = vrot.slane %v2108, 1
      %v2110 = vadd.f32 %v2108, %v2109
      %v2111 = vsel %vm799, %v2077, 0.0
      %v2112 = vrot.slane %v2111, 4
      %v2113 = vadd.f32 %v2111, %v2112
      %v2114 = vrot.slane %v2113, 2
      %v2115 = vadd.f32 %v2113, %v2114
      %v2116 = vrot.slane %v2115, 1
      %v2117 = vadd.f32 %v2115, %v2116
      %v2118 = vsel %vm799, %v2078, 0.0
      %v2119 = vrot.slane %v2118, 4
      %v2120 = vadd.f32 %v2118, %v2119
      %v2121 = vrot.slane %v2120, 2
      %v2122 = vadd.f32 %v2120, %v2121
      %v2123 = vrot.slane %v2122, 1
      %v2124 = vadd.f32 %v2122, %v2123
      %v2125 = vsel %vm799, %v2079, 0.0
      %v2126 = vrot.slane %v2125, 4
      %v2127 = vadd.f32 %v2125, %v2126
      %v2128 = vrot.slane %v2127, 2
      %v2129 = vadd.f32 %v2127, %v2128
      %v2130 = vrot.slane %v2129, 1
      %v2131 = vadd.f32 %v2129, %v2130
      %v2132 = vsel %vm799, %v2080, 0.0
      %v2133 = vrot.slane %v2132, 4
      %v2134 = vadd.f32 %v2132, %v2133
      %v2135 = vrot.slane %v2134, 2
      %v2136 = vadd.f32 %v2134, %v2135
      %v2137 = vrot.slane %v2136, 1
      %v2138 = vadd.f32 %v2136, %v2137
      %v2139 = vsel %vm799, %v2081, 0.0
      %v2140 = vrot.slane %v2139, 4
      %v2141 = vadd.f32 %v2139, %v2140
      %v2142 = vrot.slane %v2141, 2
      %v2143 = vadd.f32 %v2141, %v2142
      %v2144 = vrot.slane %v2143, 1
      %v2145 = vadd.f32 %v2143, %v2144
      %v2146 = vmul.f32 %v2096, 0.25
      %v2147 = vmul.f32 %v2103, 0.25
      %v2148 = vmul.f32 %v2110, 0.25
      %v2149 = vmul.f32 %v2117, 0.25
      %v2150 = vmul.f32 %v2124, 0.25
      %v2151 = vmul.f32 %v2131, 0.25
      %v2152 = vmul.f32 %v2138, 0.25
      %v2153 = vmul.f32 %v2145, 0.25
      %v2162 = vsel %vm1104, %v1802, %v1801
      %v2163 = vsel %vm1107, %v1803, %v2162
      %v2164 = vsel %vm1110, %v1804, %v2163
      %v2165 = vsel %vm1113, %v1805, %v2164
      %v2166 = vsel %vm1116, %v1806, %v2165
      %v2167 = vsel %vm1119, %v1807, %v2166
      %v2168 = vsel %vm1122, %v1808, %v2167
      %v2178 = vsel %vm1104, %v1922, %v1921
      %v2179 = vsel %vm1107, %v1923, %v2178
      %v2180 = vsel %vm1110, %v1924, %v2179
      %v2181 = vsel %vm1113, %v1925, %v2180
      %v2182 = vsel %vm1116, %v1926, %v2181
      %v2183 = vsel %vm1119, %v1927, %v2182
      %v2184 = vsel %vm1122, %v1928, %v2183
      %v2194 = vsel %vm1104, %v2035, %v2034
      %v2195 = vsel %vm1107, %v2036, %v2194
      %v2196 = vsel %vm1110, %v2037, %v2195
      %v2197 = vsel %vm1113, %v2038, %v2196
      %v2198 = vsel %vm1116, %v2039, %v2197
      %v2199 = vsel %vm1119, %v2040, %v2198
      %v2200 = vsel %vm1122, %v2041, %v2199
      %v2210 = vsel %vm1104, %v2147, %v2146
      %v2211 = vsel %vm1107, %v2148, %v2210
      %v2212 = vsel %vm1110, %v2149, %v2211
      %v2213 = vsel %vm1113, %v2150, %v2212
      %v2214 = vsel %vm1116, %v2151, %v2213
      %v2215 = vsel %vm1119, %v2152, %v2214
      %v2216 = vsel %vm1122, %v2153, %v2215
      %v2218 = vsel %vm1029, %v2168, %v2184
      %v2219 = vsel %vm1038, %v2218, %v2200
      %v2220 = vsel %vm1047, %v2219, %v2216
      %2221 = vst.msk [vmem:[%s222] sm:$0xff] %vm1056, %v2220
      %p2222 = scmp.lt.s32.totalorder %s16, 1
      %s2223 = scalar_select %p2222, %s16, 1
      %s2224 = smul.addr %s2223, 8
      %s2225 = scalar_lea.vmem %s5, %s2224
      // Predicated region
      $region41: #{downsample_cnn_forward.1} parent=39 // pred_check
        %p2226 = pneg %p144
      $region42: #{downsample_cnn_forward.1} parent=39 // pred_check_branch
        %2228 = sbr.rel (%p2226) target = $region44
      $region43: #{downsample_cnn_forward.1} parent=39 // pred_region
        _
      $region44: #{downsample_cnn_forward.1} parent=39 // pred_fallthru
        _
    $region40: #{downsample_cnn_forward.1} parent=5 // pred_fallthru
      _
    %p2229 = scmp.le.s32.totalorder 2, %s11
    // Predicated region
    $region45: #{downsample_cnn_forward.1} parent=5 // pred_check
      %p2230 = pneg %p2229
    $region46: #{downsample_cnn_forward.1} parent=5 // pred_check_branch
      %2232 = sbr.rel (%p2230) target = $region48
    $region47: #{downsample_cnn_forward.1} parent=5 // pred_region
      %s2233 = ssub.s32 %s11, 2
      // Predicated region
      $region49: #{downsample_cnn_forward.1} parent=47 // pred_check
        %p2234 = pneg %p150
      $region50: #{downsample_cnn_forward.1} parent=47 // pred_check_branch
        %2236 = sbr.rel (%p2234) target = $region52
      $region51: #{downsample_cnn_forward.1} parent=47 // pred_region
        %p2237 = scmp.lt.s32.totalorder %s17, 1
        %s2238 = scalar_select %p2237, %s17, 1
        %s2239 = smul.addr %s2238, 8
        %s2240 = scalar_lea.vmem %s5, %s2239
      $region52: #{downsample_cnn_forward.1} parent=47 // pred_fallthru
        _
    $region48: #{downsample_cnn_forward.1} parent=5 // pred_fallthru
      _
  $region6: #{downsample_cnn_forward.1} parent=0 // loop_footer
    %s15 = sadd.s32 1, %s11
  $region7: #{downsample_cnn_forward.1} parent=0 // loop_footer_branch
    %10 = sbr.rel target = $region3
  $region8: #{downsample_cnn_forward.1} parent=0 // loop_exit
    _

</llo_original>
